<compile_context>
chip_gen: v7x
topology: tpu7x:2x2x1
jax: 0.10.0
libtpu: 0.0.40
codegen_flags: <defaults>
</compile_context>

<pallas_src>
import jax
import jax.numpy as jnp
from jax import lax
from jax.experimental import pallas as pl
from jax.experimental.pallas import tpu as pltpu


# Matmul operand dtype.  Kept f32 here: at these toy sizes the matmuls are
# padding/latency dominated (bf16 gains nothing) and we validate against an
# f32 reference.  On v6e/v7x at realistic sizes set this to jnp.bfloat16
# (MXU-native); accumulation stays f32 via preferred_element_type and the
# cell state c is always kept in f32, so the recurrence does not drift.
MATMUL_DTYPE = jnp.float32


def _mm(a, b):
    return jnp.dot(a.astype(MATMUL_DTYPE), b.astype(MATMUL_DTYPE),
                   preferred_element_type=jnp.float32)


# ----------------------------------------------------------------------------
# Fused kernel: all LSTM layers + LayerNorm + Linear + Sparsemax.
# refs layout:
#   [0]                 x_ref      (T*B, I)     time-major, flattened
#   [1 .. 3L]           per layer: wih_t (Din,4H), whh_t (H,4H), bias (1,4H)
#                         gate columns packed as (i, f, o, g)
#   [3L+1 .. 3L+4]      gamma (1,H), beta (1,H), w_out_t (H,O), b_out (1,O)
#   [3L+5]              out_ref    (B, O)
#   [3L+6]              seq_ref    (T*B, H)     VMEM scratch (inter-layer seq)
# ----------------------------------------------------------------------------
def make_fused_lstm_kernel(T, B, H, num_layers):

    def kernel(*refs):
        x_ref = refs[0]
        layer_refs = refs[1:1 + 3 * num_layers]
        gamma_ref, beta_ref, wout_ref, bout_ref = refs[1 + 3 * num_layers:
                                                       5 + 3 * num_layers]
        out_ref = refs[5 + 3 * num_layers]
        seq_ref = refs[6 + 3 * num_layers]

        cur = x_ref[...]                                   # (T*B, Din) layer input
        h = None
        for l in range(num_layers):
            wih = layer_refs[3 * l][...].astype(MATMUL_DTYPE)       # (Din, 4H)
            whh = layer_refs[3 * l + 1][...].astype(MATMUL_DTYPE)   # (H, 4H)
            b = layer_refs[3 * l + 2][...]                          # (1, 4H)

            # Hoisted input->gates matmul: one big matmul + bias, outside the
            # recurrence (instead of T tiny latency-bound matmuls).
            xw = _mm(cur, wih) + b                          # (T*B, 4H) f32

            h = jnp.zeros((B, H), jnp.float32)
            c = jnp.zeros((B, H), jnp.float32)              # cell state in f32
            last_layer = (l == num_layers - 1)

            # Fully unrolled time loop (static T): static slices everywhere,
            # lets MXU/EUP/VPU work from adjacent steps interleave.
            for t in range(T):
                gates = xw[t * B:(t + 1) * B, :] + _mm(h, whh)      # (B, 4H)
                # gates packed (i, f, o, g): one sigmoid, one tanh.
                sig = jax.nn.sigmoid(gates[:, :3 * H])
                i_g = sig[:, 0:H]
                f_g = sig[:, H:2 * H]
                o_g = sig[:, 2 * H:3 * H]
                g_g = jnp.tanh(gates[:, 3 * H:4 * H])
                c = f_g * c + i_g * g_g
                h = o_g * jnp.tanh(c)
                if not last_layer:
                    # Only intermediate layers need the full sequence; the
                    # last layer keeps only h_last (no (T,B,H) writeback).
                    seq_ref[t * B:(t + 1) * B, :] = h
            if not last_layer:
                cur = seq_ref[...]                          # next layer input

        # ---------------- head: LayerNorm -> Linear -> Sparsemax -------------
        mean = jnp.mean(h, axis=-1, keepdims=True)
        var = jnp.mean((h - mean) ** 2, axis=-1, keepdims=True)
        y = (h - mean) * lax.rsqrt(var + 1e-5)              # PyTorch LN eps
        y = y * gamma_ref[...] + beta_ref[...]

        z = _mm(y, wout_ref[...]) + bout_ref[...]           # (B, O)

        # Sort-free sparsemax over axis=1 (exact; O(O^2) is fine for small O).
        ge = (z[:, None, :] >= z[:, :, None]).astype(jnp.float32)   # (B, O, O)
        k_i = jnp.sum(ge, axis=-1)
        s_i = jnp.sum(ge * z[:, None, :], axis=-1)
        supp = (1.0 + k_i * z > s_i).astype(jnp.float32)
        k = jnp.sum(supp, axis=-1, keepdims=True)
        s = jnp.sum(z * supp, axis=-1, keepdims=True)
        tau = (s - 1.0) / k
        out_ref[...] = jnp.maximum(z - tau, 0.0)

    return kernel


# ----------------------------------------------------------------------------
# Wrapper: parameter packing + single pallas_call.
# Note: if this model is scaled up (large T/B/H), tile the time axis with a
# grid / emit_pipeline (v7x has only 64 MiB VMEM) and add a "parallel" batch
# grid axis to use both v7x TensorCores.  At these sizes everything fits in
# VMEM and a single program is fastest.
# ----------------------------------------------------------------------------
def _reorder_gate_cols(w, H):
    # PyTorch packs gate blocks as (i, f, g, o); repack to (i, f, o, g) so the
    # kernel can apply one contiguous sigmoid over the first 3H columns.
    i, f, g, o = jnp.split(w, 4, axis=-1)
    return jnp.concatenate([i, f, o, g], axis=-1)


@jax.jit
def lstm_model_forward(x, params):
    B, T, I = x.shape
    H = params["layers"][0]["w_hh"].shape[1]
    O = params["w_out"].shape[0]
    num_layers = len(params["layers"])

    # time-major, flattened: one big input matmul per layer.
    x_flat = jnp.transpose(x, (1, 0, 2)).reshape(T * B, I).astype(jnp.float32)

    args = [x_flat]
    for lp in params["layers"]:
        args.append(_reorder_gate_cols(jnp.transpose(lp["w_ih"]), H))          # (Din, 4H)
        args.append(_reorder_gate_cols(jnp.transpose(lp["w_hh"]), H))          # (H, 4H)
        args.append(_reorder_gate_cols((lp["b_ih"] + lp["b_hh"]).reshape(1, -1), H))  # (1, 4H)
    args += [params["ln_gamma"].reshape(1, -1),
             params["ln_beta"].reshape(1, -1),
             jnp.transpose(params["w_out"]),        # (H, O)
             params["b_out"].reshape(1, -1)]        # (1, O)

    kernel = make_fused_lstm_kernel(T, B, H, num_layers)
    return pl.pallas_call(
        kernel,
        out_shape=jax.ShapeDtypeStruct((B, O), jnp.float32),
        in_specs=[pl.BlockSpec(memory_space=pltpu.MemorySpace.VMEM)] * len(args),
        out_specs=pl.BlockSpec(memory_space=pltpu.MemorySpace.VMEM),
        scratch_shapes=[pltpu.VMEM((T * B, H), jnp.float32)],   # inter-layer seq
    )(*args)


# ----------------------------------------------------------------------------
# Parameter construction (matches PyTorch nn.LSTM / nn.Linear init ranges).
# ----------------------------------------------------------------------------
def init_params(key, input_size, hidden_size, output_size, num_layers):
    params = {"layers": []}
    bound_h = 1.0 / jnp.sqrt(hidden_size)
    for layer in range(num_layers):
        d_in = input_size if layer == 0 else hidden_size
        key, k1, k2, k3, k4 = jax.random.split(key, 5)
        w_ih = jax.random.uniform(k1, (4 * hidden_size, d_in), jnp.float32,
                                  -bound_h, bound_h)
        w_hh = jax.random.uniform(k2, (4 * hidden_size, hidden_size), jnp.float32,
                                  -bound_h, bound_h)
        b_ih = jax.random.uniform(k3, (4 * hidden_size,), jnp.float32,
                                  -bound_h, bound_h)
        b_hh = jax.random.uniform(k4, (4 * hidden_size,), jnp.float32,
                                  -bound_h, bound_h)
        params["layers"].append(dict(w_ih=w_ih, w_hh=w_hh, b_ih=b_ih, b_hh=b_hh))

    params["ln_gamma"] = jnp.ones((hidden_size,), jnp.float32)
    params["ln_beta"] = jnp.zeros((hidden_size,), jnp.float32)

    key, k5, k6 = jax.random.split(key, 3)
    bound_o = 1.0 / jnp.sqrt(hidden_size)
    params["w_out"] = jax.random.uniform(k5, (output_size, hidden_size), jnp.float32,
                                         -bound_o, bound_o)
    params["b_out"] = jax.random.uniform(k6, (output_size,), jnp.float32,
                                         -bound_o, bound_o)
    return params


# ----------------------------------------------------------------------------
# Pure-JAX reference (PyTorch gate order i,f,g,o; sort-based sparsemax).
# ----------------------------------------------------------------------------
def reference_forward(x, params):
    B, T, _ = x.shape
    cur = x
    for lp in params["layers"]:
        H = lp["w_hh"].shape[1]
        h = jnp.zeros((B, H), jnp.float32)
        c = jnp.zeros((B, H), jnp.float32)
        outs = []
        for t in range(T):
            gates = cur[:, t, :] @ lp["w_ih"].T + h @ lp["w_hh"].T + lp["b_ih"] + lp["b_hh"]
            i_g = jax.nn.sigmoid(gates[:, 0 * H:1 * H])
            f_g = jax.nn.sigmoid(gates[:, 1 * H:2 * H])
            g_g = jnp.tanh(gates[:, 2 * H:3 * H])
            o_g = jax.nn.sigmoid(gates[:, 3 * H:4 * H])
            c = f_g * c + i_g * g_g
            h = o_g * jnp.tanh(c)
            outs.append(h)
        cur = jnp.stack(outs, axis=1)
    h_last = cur[:, -1, :]
    mean = jnp.mean(h_last, axis=-1, keepdims=True)
    var = jnp.mean((h_last - mean) ** 2, axis=-1, keepdims=True)
    y = (h_last - mean) / jnp.sqrt(var + 1e-5)
    y = y * params["ln_gamma"] + params["ln_beta"]
    z = y @ params["w_out"].T + params["b_out"]
    zs = jnp.sort(z, axis=1)[:, ::-1]
    ks = jnp.arange(1, z.shape[1] + 1, dtype=jnp.float32)
    css = jnp.cumsum(zs, axis=1)
    cond = (1.0 + ks * zs > css).astype(jnp.float32)
    k = jnp.sum(cond, axis=1, keepdims=True)
    s = jnp.sum(zs * cond, axis=1, keepdims=True)
    tau = (s - 1.0) / k
    return jnp.maximum(z - tau, 0.0)


if __name__ == "__main__":
    # Small, module-consistent shapes.
    batch, seq, input_size, hidden_size, output_size, num_layers = 2, 8, 4, 32, 8, 2

    key = jax.random.PRNGKey(0)
    key, kx, kp = jax.random.split(key, 3)
    x = jax.random.normal(kx, (batch, seq, input_size), jnp.float32)
    params = init_params(kp, input_size, hidden_size, output_size, num_layers)

    out = lstm_model_forward(x, params)
    out = jax.block_until_ready(out)

    ref = reference_forward(x, params)
    assert out.shape == (batch, output_size)
    assert jnp.allclose(out, ref, atol=5e-4, rtol=5e-4), "mismatch vs JAX reference"
    # Sparsemax rows sum to 1.
    assert jnp.allclose(jnp.sum(out, axis=1), jnp.ones((batch,)), atol=1e-4)

    print("KERNEL_OK")
</pallas_src>

<mosaic_0001>
module attributes {stable_mosaic.version = 11 : i64} {
  func.func @kernel(%arg0: memref<16x4xf32, #tpu.memory_space<vmem>>, %arg1: memref<4x128xf32, #tpu.memory_space<vmem>>, %arg2: memref<32x128xf32, #tpu.memory_space<vmem>>, %arg3: memref<1x128xf32, #tpu.memory_space<vmem>>, %arg4: memref<32x128xf32, #tpu.memory_space<vmem>>, %arg5: memref<32x128xf32, #tpu.memory_space<vmem>>, %arg6: memref<1x128xf32, #tpu.memory_space<vmem>>, %arg7: memref<1x32xf32, #tpu.memory_space<vmem>>, %arg8: memref<1x32xf32, #tpu.memory_space<vmem>>, %arg9: memref<32x8xf32, #tpu.memory_space<vmem>>, %arg10: memref<1x8xf32, #tpu.memory_space<vmem>>, %arg11: memref<2x8xf32, #tpu.memory_space<vmem>>, %arg12: memref<16x32xf32, #tpu.memory_space<vmem>>) attributes {dimension_semantics = [], scalar_prefetch = 0 : i64, scratch_operands = 1 : i64, tpu.core_type = #tpu.core_type<tc>} {
    %c0 = arith.constant 0 : index
    %c0_0 = arith.constant 0 : index
    %0 = vector.load %arg0[%c0, %c0_0] : memref<16x4xf32, #tpu.memory_space<vmem>>, vector<16x4xf32>
    %c0_1 = arith.constant 0 : index
    %c0_2 = arith.constant 0 : index
    %1 = vector.load %arg1[%c0_1, %c0_2] : memref<4x128xf32, #tpu.memory_space<vmem>>, vector<4x128xf32>
    %c0_3 = arith.constant 0 : index
    %c0_4 = arith.constant 0 : index
    %2 = vector.load %arg2[%c0_3, %c0_4] : memref<32x128xf32, #tpu.memory_space<vmem>>, vector<32x128xf32>
    %c0_5 = arith.constant 0 : index
    %c0_6 = arith.constant 0 : index
    %3 = vector.load %arg3[%c0_5, %c0_6] : memref<1x128xf32, #tpu.memory_space<vmem>>, vector<1x128xf32>
    %cst = arith.constant dense<0.000000e+00> : vector<16x128xf32>
    %4 = tpu.matmul %0, %1, %cst {dimension_numbers = #tpu.dot_dimension_numbers<[1], [0], [0], [1], [0, 0, 1, 1], [], []>} : vector<16x4xf32>, vector<4x128xf32>, vector<16x128xf32> -> vector<16x128xf32>
    %5 = vector.broadcast %3 : vector<1x128xf32> to vector<16x128xf32>
    %6 = arith.addf %4, %5 : vector<16x128xf32>
    %cst_7 = arith.constant 0.000000e+00 : f32
    %7 = vector.broadcast %cst_7 : f32 to vector<2x32xf32>
    %cst_8 = arith.constant 0.000000e+00 : f32
    %8 = vector.broadcast %cst_8 : f32 to vector<2x32xf32>
    %9 = vector.extract_strided_slice %6 {offsets = [0, 0], sizes = [2, 128], strides = [1, 1]} : vector<16x128xf32> to vector<2x128xf32>
    %cst_9 = arith.constant dense<0.000000e+00> : vector<2x128xf32>
    %10 = tpu.matmul %7, %2, %cst_9 {dimension_numbers = #tpu.dot_dimension_numbers<[1], [0], [0], [1], [0, 0, 1, 1], [], []>} : vector<2x32xf32>, vector<32x128xf32>, vector<2x128xf32> -> vector<2x128xf32>
    %11 = arith.addf %9, %10 : vector<2x128xf32>
    %12 = vector.extract_strided_slice %11 {offsets = [0, 0], sizes = [2, 96], strides = [1, 1]} : vector<2x128xf32> to vector<2x96xf32>
    %13 = arith.negf %12 : vector<2x96xf32>
    %14 = math.exp %13 : vector<2x96xf32>
    %cst_10 = arith.constant 1.000000e+00 : f32
    %15 = vector.broadcast %cst_10 : f32 to vector<2x96xf32>
    %16 = arith.addf %15, %14 : vector<2x96xf32>
    %17 = arith.divf %15, %16 : vector<2x96xf32>
    %18 = vector.extract_strided_slice %17 {offsets = [0, 0], sizes = [2, 32], strides = [1, 1]} : vector<2x96xf32> to vector<2x32xf32>
    %19 = vector.extract_strided_slice %17 {offsets = [0, 32], sizes = [2, 32], strides = [1, 1]} : vector<2x96xf32> to vector<2x32xf32>
    %20 = vector.extract_strided_slice %17 {offsets = [0, 64], sizes = [2, 32], strides = [1, 1]} : vector<2x96xf32> to vector<2x32xf32>
    %21 = vector.extract_strided_slice %11 {offsets = [0, 96], sizes = [2, 32], strides = [1, 1]} : vector<2x128xf32> to vector<2x32xf32>
    %22 = math.tanh %21 : vector<2x32xf32>
    %23 = arith.mulf %19, %8 : vector<2x32xf32>
    %24 = arith.mulf %18, %22 : vector<2x32xf32>
    %25 = arith.addf %23, %24 : vector<2x32xf32>
    %26 = math.tanh %25 : vector<2x32xf32>
    %27 = arith.mulf %20, %26 : vector<2x32xf32>
    %c0_11 = arith.constant 0 : index
    %c0_12 = arith.constant 0 : index
    %28 = vector.load %arg12[%c0_11, %c0_12] : memref<16x32xf32, #tpu.memory_space<vmem>>, vector<2x32xf32>
    tpu.vector_store %arg12[%c0_11, %c0_12], %27 {strides = array<i32>} : memref<16x32xf32, #tpu.memory_space<vmem>>, vector<2x32xf32>,
    %29 = vector.extract_strided_slice %6 {offsets = [2, 0], sizes = [2, 128], strides = [1, 1]} : vector<16x128xf32> to vector<2x128xf32>
    %cst_13 = arith.constant dense<0.000000e+00> : vector<2x128xf32>
    %30 = tpu.matmul %27, %2, %cst_13 {dimension_numbers = #tpu.dot_dimension_numbers<[1], [0], [0], [1], [0, 0, 1, 1], [], []>} : vector<2x32xf32>, vector<32x128xf32>, vector<2x128xf32> -> vector<2x128xf32>
    %31 = arith.addf %29, %30 : vector<2x128xf32>
    %32 = vector.extract_strided_slice %31 {offsets = [0, 0], sizes = [2, 96], strides = [1, 1]} : vector<2x128xf32> to vector<2x96xf32>
    %33 = arith.negf %32 : vector<2x96xf32>
    %34 = math.exp %33 : vector<2x96xf32>
    %cst_14 = arith.constant 1.000000e+00 : f32
    %35 = vector.broadcast %cst_14 : f32 to vector<2x96xf32>
    %36 = arith.addf %35, %34 : vector<2x96xf32>
    %37 = arith.divf %35, %36 : vector<2x96xf32>
    %38 = vector.extract_strided_slice %37 {offsets = [0, 0], sizes = [2, 32], strides = [1, 1]} : vector<2x96xf32> to vector<2x32xf32>
    %39 = vector.extract_strided_slice %37 {offsets = [0, 32], sizes = [2, 32], strides = [1, 1]} : vector<2x96xf32> to vector<2x32xf32>
    %40 = vector.extract_strided_slice %37 {offsets = [0, 64], sizes = [2, 32], strides = [1, 1]} : vector<2x96xf32> to vector<2x32xf32>
    %41 = vector.extract_strided_slice %31 {offsets = [0, 96], sizes = [2, 32], strides = [1, 1]} : vector<2x128xf32> to vector<2x32xf32>
    %42 = math.tanh %41 : vector<2x32xf32>
    %43 = arith.mulf %39, %25 : vector<2x32xf32>
    %44 = arith.mulf %38, %42 : vector<2x32xf32>
    %45 = arith.addf %43, %44 : vector<2x32xf32>
    %46 = math.tanh %45 : vector<2x32xf32>
    %47 = arith.mulf %40, %46 : vector<2x32xf32>
    %c2 = arith.constant 2 : index
    %c0_15 = arith.constant 0 : index
    %48 = vector.load %arg12[%c2, %c0_15] : memref<16x32xf32, #tpu.memory_space<vmem>>, vector<2x32xf32>
    tpu.vector_store %arg12[%c2, %c0_15], %47 {strides = array<i32>} : memref<16x32xf32, #tpu.memory_space<vmem>>, vector<2x32xf32>,
    %49 = vector.extract_strided_slice %6 {offsets = [4, 0], sizes = [2, 128], strides = [1, 1]} : vector<16x128xf32> to vector<2x128xf32>
    %cst_16 = arith.constant dense<0.000000e+00> : vector<2x128xf32>
    %50 = tpu.matmul %47, %2, %cst_16 {dimension_numbers = #tpu.dot_dimension_numbers<[1], [0], [0], [1], [0, 0, 1, 1], [], []>} : vector<2x32xf32>, vector<32x128xf32>, vector<2x128xf32> -> vector<2x128xf32>
    %51 = arith.addf %49, %50 : vector<2x128xf32>
    %52 = vector.extract_strided_slice %51 {offsets = [0, 0], sizes = [2, 96], strides = [1, 1]} : vector<2x128xf32> to vector<2x96xf32>
    %53 = arith.negf %52 : vector<2x96xf32>
    %54 = math.exp %53 : vector<2x96xf32>
    %cst_17 = arith.constant 1.000000e+00 : f32
    %55 = vector.broadcast %cst_17 : f32 to vector<2x96xf32>
    %56 = arith.addf %55, %54 : vector<2x96xf32>
    %57 = arith.divf %55, %56 : vector<2x96xf32>
    %58 = vector.extract_strided_slice %57 {offsets = [0, 0], sizes = [2, 32], strides = [1, 1]} : vector<2x96xf32> to vector<2x32xf32>
    %59 = vector.extract_strided_slice %57 {offsets = [0, 32], sizes = [2, 32], strides = [1, 1]} : vector<2x96xf32> to vector<2x32xf32>
    %60 = vector.extract_strided_slice %57 {offsets = [0, 64], sizes = [2, 32], strides = [1, 1]} : vector<2x96xf32> to vector<2x32xf32>
    %61 = vector.extract_strided_slice %51 {offsets = [0, 96], sizes = [2, 32], strides = [1, 1]} : vector<2x128xf32> to vector<2x32xf32>
    %62 = math.tanh %61 : vector<2x32xf32>
    %63 = arith.mulf %59, %45 : vector<2x32xf32>
    %64 = arith.mulf %58, %62 : vector<2x32xf32>
    %65 = arith.addf %63, %64 : vector<2x32xf32>
    %66 = math.tanh %65 : vector<2x32xf32>
    %67 = arith.mulf %60, %66 : vector<2x32xf32>
    %c4 = arith.constant 4 : index
    %c0_18 = arith.constant 0 : index
    %68 = vector.load %arg12[%c4, %c0_18] : memref<16x32xf32, #tpu.memory_space<vmem>>, vector<2x32xf32>
    tpu.vector_store %arg12[%c4, %c0_18], %67 {strides = array<i32>} : memref<16x32xf32, #tpu.memory_space<vmem>>, vector<2x32xf32>,
    %69 = vector.extract_strided_slice %6 {offsets = [6, 0], sizes = [2, 128], strides = [1, 1]} : vector<16x128xf32> to vector<2x128xf32>
    %cst_19 = arith.constant dense<0.000000e+00> : vector<2x128xf32>
    %70 = tpu.matmul %67, %2, %cst_19 {dimension_numbers = #tpu.dot_dimension_numbers<[1], [0], [0], [1], [0, 0, 1, 1], [], []>} : vector<2x32xf32>, vector<32x128xf32>, vector<2x128xf32> -> vector<2x128xf32>
    %71 = arith.addf %69, %70 : vector<2x128xf32>
    %72 = vector.extract_strided_slice %71 {offsets = [0, 0], sizes = [2, 96], strides = [1, 1]} : vector<2x128xf32> to vector<2x96xf32>
    %73 = arith.negf %72 : vector<2x96xf32>
    %74 = math.exp %73 : vector<2x96xf32>
    %cst_20 = arith.constant 1.000000e+00 : f32
    %75 = vector.broadcast %cst_20 : f32 to vector<2x96xf32>
    %76 = arith.addf %75, %74 : vector<2x96xf32>
    %77 = arith.divf %75, %76 : vector<2x96xf32>
    %78 = vector.extract_strided_slice %77 {offsets = [0, 0], sizes = [2, 32], strides = [1, 1]} : vector<2x96xf32> to vector<2x32xf32>
    %79 = vector.extract_strided_slice %77 {offsets = [0, 32], sizes = [2, 32], strides = [1, 1]} : vector<2x96xf32> to vector<2x32xf32>
    %80 = vector.extract_strided_slice %77 {offsets = [0, 64], sizes = [2, 32], strides = [1, 1]} : vector<2x96xf32> to vector<2x32xf32>
    %81 = vector.extract_strided_slice %71 {offsets = [0, 96], sizes = [2, 32], strides = [1, 1]} : vector<2x128xf32> to vector<2x32xf32>
    %82 = math.tanh %81 : vector<2x32xf32>
    %83 = arith.mulf %79, %65 : vector<2x32xf32>
    %84 = arith.mulf %78, %82 : vector<2x32xf32>
    %85 = arith.addf %83, %84 : vector<2x32xf32>
    %86 = math.tanh %85 : vector<2x32xf32>
    %87 = arith.mulf %80, %86 : vector<2x32xf32>
    %c6 = arith.constant 6 : index
    %c0_21 = arith.constant 0 : index
    %88 = vector.load %arg12[%c6, %c0_21] : memref<16x32xf32, #tpu.memory_space<vmem>>, vector<2x32xf32>
    tpu.vector_store %arg12[%c6, %c0_21], %87 {strides = array<i32>} : memref<16x32xf32, #tpu.memory_space<vmem>>, vector<2x32xf32>,
    %89 = vector.extract_strided_slice %6 {offsets = [8, 0], sizes = [2, 128], strides = [1, 1]} : vector<16x128xf32> to vector<2x128xf32>
    %cst_22 = arith.constant dense<0.000000e+00> : vector<2x128xf32>
    %90 = tpu.matmul %87, %2, %cst_22 {dimension_numbers = #tpu.dot_dimension_numbers<[1], [0], [0], [1], [0, 0, 1, 1], [], []>} : vector<2x32xf32>, vector<32x128xf32>, vector<2x128xf32> -> vector<2x128xf32>
    %91 = arith.addf %89, %90 : vector<2x128xf32>
    %92 = vector.extract_strided_slice %91 {offsets = [0, 0], sizes = [2, 96], strides = [1, 1]} : vector<2x128xf32> to vector<2x96xf32>
    %93 = arith.negf %92 : vector<2x96xf32>
    %94 = math.exp %93 : vector<2x96xf32>
    %cst_23 = arith.constant 1.000000e+00 : f32
    %95 = vector.broadcast %cst_23 : f32 to vector<2x96xf32>
    %96 = arith.addf %95, %94 : vector<2x96xf32>
    %97 = arith.divf %95, %96 : vector<2x96xf32>
    %98 = vector.extract_strided_slice %97 {offsets = [0, 0], sizes = [2, 32], strides = [1, 1]} : vector<2x96xf32> to vector<2x32xf32>
    %99 = vector.extract_strided_slice %97 {offsets = [0, 32], sizes = [2, 32], strides = [1, 1]} : vector<2x96xf32> to vector<2x32xf32>
    %100 = vector.extract_strided_slice %97 {offsets = [0, 64], sizes = [2, 32], strides = [1, 1]} : vector<2x96xf32> to vector<2x32xf32>
    %101 = vector.extract_strided_slice %91 {offsets = [0, 96], sizes = [2, 32], strides = [1, 1]} : vector<2x128xf32> to vector<2x32xf32>
    %102 = math.tanh %101 : vector<2x32xf32>
    %103 = arith.mulf %99, %85 : vector<2x32xf32>
    %104 = arith.mulf %98, %102 : vector<2x32xf32>
    %105 = arith.addf %103, %104 : vector<2x32xf32>
    %106 = math.tanh %105 : vector<2x32xf32>
    %107 = arith.mulf %100, %106 : vector<2x32xf32>
    %c8 = arith.constant 8 : index
    %c0_24 = arith.constant 0 : index
    %108 = vector.load %arg12[%c8, %c0_24] : memref<16x32xf32, #tpu.memory_space<vmem>>, vector<2x32xf32>
    tpu.vector_store %arg12[%c8, %c0_24], %107 {strides = array<i32>} : memref<16x32xf32, #tpu.memory_space<vmem>>, vector<2x32xf32>,
    %109 = vector.extract_strided_slice %6 {offsets = [10, 0], sizes = [2, 128], strides = [1, 1]} : vector<16x128xf32> to vector<2x128xf32>
    %cst_25 = arith.constant dense<0.000000e+00> : vector<2x128xf32>
    %110 = tpu.matmul %107, %2, %cst_25 {dimension_numbers = #tpu.dot_dimension_numbers<[1], [0], [0], [1], [0, 0, 1, 1], [], []>} : vector<2x32xf32>, vector<32x128xf32>, vector<2x128xf32> -> vector<2x128xf32>
    %111 = arith.addf %109, %110 : vector<2x128xf32>
    %112 = vector.extract_strided_slice %111 {offsets = [0, 0], sizes = [2, 96], strides = [1, 1]} : vector<2x128xf32> to vector<2x96xf32>
    %113 = arith.negf %112 : vector<2x96xf32>
    %114 = math.exp %113 : vector<2x96xf32>
    %cst_26 = arith.constant 1.000000e+00 : f32
    %115 = vector.broadcast %cst_26 : f32 to vector<2x96xf32>
    %116 = arith.addf %115, %114 : vector<2x96xf32>
    %117 = arith.divf %115, %116 : vector<2x96xf32>
    %118 = vector.extract_strided_slice %117 {offsets = [0, 0], sizes = [2, 32], strides = [1, 1]} : vector<2x96xf32> to vector<2x32xf32>
    %119 = vector.extract_strided_slice %117 {offsets = [0, 32], sizes = [2, 32], strides = [1, 1]} : vector<2x96xf32> to vector<2x32xf32>
    %120 = vector.extract_strided_slice %117 {offsets = [0, 64], sizes = [2, 32], strides = [1, 1]} : vector<2x96xf32> to vector<2x32xf32>
    %121 = vector.extract_strided_slice %111 {offsets = [0, 96], sizes = [2, 32], strides = [1, 1]} : vector<2x128xf32> to vector<2x32xf32>
    %122 = math.tanh %121 : vector<2x32xf32>
    %123 = arith.mulf %119, %105 : vector<2x32xf32>
    %124 = arith.mulf %118, %122 : vector<2x32xf32>
    %125 = arith.addf %123, %124 : vector<2x32xf32>
    %126 = math.tanh %125 : vector<2x32xf32>
    %127 = arith.mulf %120, %126 : vector<2x32xf32>
    %c10 = arith.constant 10 : index
    %c0_27 = arith.constant 0 : index
    %128 = vector.load %arg12[%c10, %c0_27] : memref<16x32xf32, #tpu.memory_space<vmem>>, vector<2x32xf32>
    tpu.vector_store %arg12[%c10, %c0_27], %127 {strides = array<i32>} : memref<16x32xf32, #tpu.memory_space<vmem>>, vector<2x32xf32>,
    %129 = vector.extract_strided_slice %6 {offsets = [12, 0], sizes = [2, 128], strides = [1, 1]} : vector<16x128xf32> to vector<2x128xf32>
    %cst_28 = arith.constant dense<0.000000e+00> : vector<2x128xf32>
    %130 = tpu.matmul %127, %2, %cst_28 {dimension_numbers = #tpu.dot_dimension_numbers<[1], [0], [0], [1], [0, 0, 1, 1], [], []>} : vector<2x32xf32>, vector<32x128xf32>, vector<2x128xf32> -> vector<2x128xf32>
    %131 = arith.addf %129, %130 : vector<2x128xf32>
    %132 = vector.extract_strided_slice %131 {offsets = [0, 0], sizes = [2, 96], strides = [1, 1]} : vector<2x128xf32> to vector<2x96xf32>
    %133 = arith.negf %132 : vector<2x96xf32>
    %134 = math.exp %133 : vector<2x96xf32>
    %cst_29 = arith.constant 1.000000e+00 : f32
    %135 = vector.broadcast %cst_29 : f32 to vector<2x96xf32>
    %136 = arith.addf %135, %134 : vector<2x96xf32>
    %137 = arith.divf %135, %136 : vector<2x96xf32>
    %138 = vector.extract_strided_slice %137 {offsets = [0, 0], sizes = [2, 32], strides = [1, 1]} : vector<2x96xf32> to vector<2x32xf32>
    %139 = vector.extract_strided_slice %137 {offsets = [0, 32], sizes = [2, 32], strides = [1, 1]} : vector<2x96xf32> to vector<2x32xf32>
    %140 = vector.extract_strided_slice %137 {offsets = [0, 64], sizes = [2, 32], strides = [1, 1]} : vector<2x96xf32> to vector<2x32xf32>
    %141 = vector.extract_strided_slice %131 {offsets = [0, 96], sizes = [2, 32], strides = [1, 1]} : vector<2x128xf32> to vector<2x32xf32>
    %142 = math.tanh %141 : vector<2x32xf32>
    %143 = arith.mulf %139, %125 : vector<2x32xf32>
    %144 = arith.mulf %138, %142 : vector<2x32xf32>
    %145 = arith.addf %143, %144 : vector<2x32xf32>
    %146 = math.tanh %145 : vector<2x32xf32>
    %147 = arith.mulf %140, %146 : vector<2x32xf32>
    %c12 = arith.constant 12 : index
    %c0_30 = arith.constant 0 : index
    %148 = vector.load %arg12[%c12, %c0_30] : memref<16x32xf32, #tpu.memory_space<vmem>>, vector<2x32xf32>
    tpu.vector_store %arg12[%c12, %c0_30], %147 {strides = array<i32>} : memref<16x32xf32, #tpu.memory_space<vmem>>, vector<2x32xf32>,
    %149 = vector.extract_strided_slice %6 {offsets = [14, 0], sizes = [2, 128], strides = [1, 1]} : vector<16x128xf32> to vector<2x128xf32>
    %cst_31 = arith.constant dense<0.000000e+00> : vector<2x128xf32>
    %150 = tpu.matmul %147, %2, %cst_31 {dimension_numbers = #tpu.dot_dimension_numbers<[1], [0], [0], [1], [0, 0, 1, 1], [], []>} : vector<2x32xf32>, vector<32x128xf32>, vector<2x128xf32> -> vector<2x128xf32>
    %151 = arith.addf %149, %150 : vector<2x128xf32>
    %152 = vector.extract_strided_slice %151 {offsets = [0, 0], sizes = [2, 96], strides = [1, 1]} : vector<2x128xf32> to vector<2x96xf32>
    %153 = arith.negf %152 : vector<2x96xf32>
    %154 = math.exp %153 : vector<2x96xf32>
    %cst_32 = arith.constant 1.000000e+00 : f32
    %155 = vector.broadcast %cst_32 : f32 to vector<2x96xf32>
    %156 = arith.addf %155, %154 : vector<2x96xf32>
    %157 = arith.divf %155, %156 : vector<2x96xf32>
    %158 = vector.extract_strided_slice %157 {offsets = [0, 0], sizes = [2, 32], strides = [1, 1]} : vector<2x96xf32> to vector<2x32xf32>
    %159 = vector.extract_strided_slice %157 {offsets = [0, 32], sizes = [2, 32], strides = [1, 1]} : vector<2x96xf32> to vector<2x32xf32>
    %160 = vector.extract_strided_slice %157 {offsets = [0, 64], sizes = [2, 32], strides = [1, 1]} : vector<2x96xf32> to vector<2x32xf32>
    %161 = vector.extract_strided_slice %151 {offsets = [0, 96], sizes = [2, 32], strides = [1, 1]} : vector<2x128xf32> to vector<2x32xf32>
    %162 = math.tanh %161 : vector<2x32xf32>
    %163 = arith.mulf %159, %145 : vector<2x32xf32>
    %164 = arith.mulf %158, %162 : vector<2x32xf32>
    %165 = arith.addf %163, %164 : vector<2x32xf32>
    %166 = math.tanh %165 : vector<2x32xf32>
    %167 = arith.mulf %160, %166 : vector<2x32xf32>
    %c14 = arith.constant 14 : index
    %c0_33 = arith.constant 0 : index
    %168 = vector.load %arg12[%c14, %c0_33] : memref<16x32xf32, #tpu.memory_space<vmem>>, vector<2x32xf32>
    tpu.vector_store %arg12[%c14, %c0_33], %167 {strides = array<i32>} : memref<16x32xf32, #tpu.memory_space<vmem>>, vector<2x32xf32>,
    %c0_34 = arith.constant 0 : index
    %c0_35 = arith.constant 0 : index
    %169 = vector.load %arg12[%c0_34, %c0_35] : memref<16x32xf32, #tpu.memory_space<vmem>>, vector<16x32xf32>
    %c0_36 = arith.constant 0 : index
    %c0_37 = arith.constant 0 : index
    %170 = vector.load %arg4[%c0_36, %c0_37] : memref<32x128xf32, #tpu.memory_space<vmem>>, vector<32x128xf32>
    %c0_38 = arith.constant 0 : index
    %c0_39 = arith.constant 0 : index
    %171 = vector.load %arg5[%c0_38, %c0_39] : memref<32x128xf32, #tpu.memory_space<vmem>>, vector<32x128xf32>
    %c0_40 = arith.constant 0 : index
    %c0_41 = arith.constant 0 : index
    %172 = vector.load %arg6[%c0_40, %c0_41] : memref<1x128xf32, #tpu.memory_space<vmem>>, vector<1x128xf32>
    %cst_42 = arith.constant dense<0.000000e+00> : vector<16x128xf32>
    %173 = tpu.matmul %169, %170, %cst_42 {dimension_numbers = #tpu.dot_dimension_numbers<[1], [0], [0], [1], [0, 0, 1, 1], [], []>} : vector<16x32xf32>, vector<32x128xf32>, vector<16x128xf32> -> vector<16x128xf32>
    %174 = vector.broadcast %172 : vector<1x128xf32> to vector<16x128xf32>
    %175 = arith.addf %173, %174 : vector<16x128xf32>
    %cst_43 = arith.constant 0.000000e+00 : f32
    %176 = vector.broadcast %cst_43 : f32 to vector<2x32xf32>
    %cst_44 = arith.constant 0.000000e+00 : f32
    %177 = vector.broadcast %cst_44 : f32 to vector<2x32xf32>
    %178 = vector.extract_strided_slice %175 {offsets = [0, 0], sizes = [2, 128], strides = [1, 1]} : vector<16x128xf32> to vector<2x128xf32>
    %cst_45 = arith.constant dense<0.000000e+00> : vector<2x128xf32>
    %179 = tpu.matmul %176, %171, %cst_45 {dimension_numbers = #tpu.dot_dimension_numbers<[1], [0], [0], [1], [0, 0, 1, 1], [], []>} : vector<2x32xf32>, vector<32x128xf32>, vector<2x128xf32> -> vector<2x128xf32>
    %180 = arith.addf %178, %179 : vector<2x128xf32>
    %181 = vector.extract_strided_slice %180 {offsets = [0, 0], sizes = [2, 96], strides = [1, 1]} : vector<2x128xf32> to vector<2x96xf32>
    %182 = arith.negf %181 : vector<2x96xf32>
    %183 = math.exp %182 : vector<2x96xf32>
    %cst_46 = arith.constant 1.000000e+00 : f32
    %184 = vector.broadcast %cst_46 : f32 to vector<2x96xf32>
    %185 = arith.addf %184, %183 : vector<2x96xf32>
    %186 = arith.divf %184, %185 : vector<2x96xf32>
    %187 = vector.extract_strided_slice %186 {offsets = [0, 0], sizes = [2, 32], strides = [1, 1]} : vector<2x96xf32> to vector<2x32xf32>
    %188 = vector.extract_strided_slice %186 {offsets = [0, 32], sizes = [2, 32], strides = [1, 1]} : vector<2x96xf32> to vector<2x32xf32>
    %189 = vector.extract_strided_slice %186 {offsets = [0, 64], sizes = [2, 32], strides = [1, 1]} : vector<2x96xf32> to vector<2x32xf32>
    %190 = vector.extract_strided_slice %180 {offsets = [0, 96], sizes = [2, 32], strides = [1, 1]} : vector<2x128xf32> to vector<2x32xf32>
    %191 = math.tanh %190 : vector<2x32xf32>
    %192 = arith.mulf %188, %177 : vector<2x32xf32>
    %193 = arith.mulf %187, %191 : vector<2x32xf32>
    %194 = arith.addf %192, %193 : vector<2x32xf32>
    %195 = math.tanh %194 : vector<2x32xf32>
    %196 = arith.mulf %189, %195 : vector<2x32xf32>
    %197 = vector.extract_strided_slice %175 {offsets = [2, 0], sizes = [2, 128], strides = [1, 1]} : vector<16x128xf32> to vector<2x128xf32>
    %cst_47 = arith.constant dense<0.000000e+00> : vector<2x128xf32>
    %198 = tpu.matmul %196, %171, %cst_47 {dimension_numbers = #tpu.dot_dimension_numbers<[1], [0], [0], [1], [0, 0, 1, 1], [], []>} : vector<2x32xf32>, vector<32x128xf32>, vector<2x128xf32> -> vector<2x128xf32>
    %199 = arith.addf %197, %198 : vector<2x128xf32>
    %200 = vector.extract_strided_slice %199 {offsets = [0, 0], sizes = [2, 96], strides = [1, 1]} : vector<2x128xf32> to vector<2x96xf32>
    %201 = arith.negf %200 : vector<2x96xf32>
    %202 = math.exp %201 : vector<2x96xf32>
    %cst_48 = arith.constant 1.000000e+00 : f32
    %203 = vector.broadcast %cst_48 : f32 to vector<2x96xf32>
    %204 = arith.addf %203, %202 : vector<2x96xf32>
    %205 = arith.divf %203, %204 : vector<2x96xf32>
    %206 = vector.extract_strided_slice %205 {offsets = [0, 0], sizes = [2, 32], strides = [1, 1]} : vector<2x96xf32> to vector<2x32xf32>
    %207 = vector.extract_strided_slice %205 {offsets = [0, 32], sizes = [2, 32], strides = [1, 1]} : vector<2x96xf32> to vector<2x32xf32>
    %208 = vector.extract_strided_slice %205 {offsets = [0, 64], sizes = [2, 32], strides = [1, 1]} : vector<2x96xf32> to vector<2x32xf32>
    %209 = vector.extract_strided_slice %199 {offsets = [0, 96], sizes = [2, 32], strides = [1, 1]} : vector<2x128xf32> to vector<2x32xf32>
    %210 = math.tanh %209 : vector<2x32xf32>
    %211 = arith.mulf %207, %194 : vector<2x32xf32>
    %212 = arith.mulf %206, %210 : vector<2x32xf32>
    %213 = arith.addf %211, %212 : vector<2x32xf32>
    %214 = math.tanh %213 : vector<2x32xf32>
    %215 = arith.mulf %208, %214 : vector<2x32xf32>
    %216 = vector.extract_strided_slice %175 {offsets = [4, 0], sizes = [2, 128], strides = [1, 1]} : vector<16x128xf32> to vector<2x128xf32>
    %cst_49 = arith.constant dense<0.000000e+00> : vector<2x128xf32>
    %217 = tpu.matmul %215, %171, %cst_49 {dimension_numbers = #tpu.dot_dimension_numbers<[1], [0], [0], [1], [0, 0, 1, 1], [], []>} : vector<2x32xf32>, vector<32x128xf32>, vector<2x128xf32> -> vector<2x128xf32>
    %218 = arith.addf %216, %217 : vector<2x128xf32>
    %219 = vector.extract_strided_slice %218 {offsets = [0, 0], sizes = [2, 96], strides = [1, 1]} : vector<2x128xf32> to vector<2x96xf32>
    %220 = arith.negf %219 : vector<2x96xf32>
    %221 = math.exp %220 : vector<2x96xf32>
    %cst_50 = arith.constant 1.000000e+00 : f32
    %222 = vector.broadcast %cst_50 : f32 to vector<2x96xf32>
    %223 = arith.addf %222, %221 : vector<2x96xf32>
    %224 = arith.divf %222, %223 : vector<2x96xf32>
    %225 = vector.extract_strided_slice %224 {offsets = [0, 0], sizes = [2, 32], strides = [1, 1]} : vector<2x96xf32> to vector<2x32xf32>
    %226 = vector.extract_strided_slice %224 {offsets = [0, 32], sizes = [2, 32], strides = [1, 1]} : vector<2x96xf32> to vector<2x32xf32>
    %227 = vector.extract_strided_slice %224 {offsets = [0, 64], sizes = [2, 32], strides = [1, 1]} : vector<2x96xf32> to vector<2x32xf32>
    %228 = vector.extract_strided_slice %218 {offsets = [0, 96], sizes = [2, 32], strides = [1, 1]} : vector<2x128xf32> to vector<2x32xf32>
    %229 = math.tanh %228 : vector<2x32xf32>
    %230 = arith.mulf %226, %213 : vector<2x32xf32>
    %231 = arith.mulf %225, %229 : vector<2x32xf32>
    %232 = arith.addf %230, %231 : vector<2x32xf32>
    %233 = math.tanh %232 : vector<2x32xf32>
    %234 = arith.mulf %227, %233 : vector<2x32xf32>
    %235 = vector.extract_strided_slice %175 {offsets = [6, 0], sizes = [2, 128], strides = [1, 1]} : vector<16x128xf32> to vector<2x128xf32>
    %cst_51 = arith.constant dense<0.000000e+00> : vector<2x128xf32>
    %236 = tpu.matmul %234, %171, %cst_51 {dimension_numbers = #tpu.dot_dimension_numbers<[1], [0], [0], [1], [0, 0, 1, 1], [], []>} : vector<2x32xf32>, vector<32x128xf32>, vector<2x128xf32> -> vector<2x128xf32>
    %237 = arith.addf %235, %236 : vector<2x128xf32>
    %238 = vector.extract_strided_slice %237 {offsets = [0, 0], sizes = [2, 96], strides = [1, 1]} : vector<2x128xf32> to vector<2x96xf32>
    %239 = arith.negf %238 : vector<2x96xf32>
    %240 = math.exp %239 : vector<2x96xf32>
    %cst_52 = arith.constant 1.000000e+00 : f32
    %241 = vector.broadcast %cst_52 : f32 to vector<2x96xf32>
    %242 = arith.addf %241, %240 : vector<2x96xf32>
    %243 = arith.divf %241, %242 : vector<2x96xf32>
    %244 = vector.extract_strided_slice %243 {offsets = [0, 0], sizes = [2, 32], strides = [1, 1]} : vector<2x96xf32> to vector<2x32xf32>
    %245 = vector.extract_strided_slice %243 {offsets = [0, 32], sizes = [2, 32], strides = [1, 1]} : vector<2x96xf32> to vector<2x32xf32>
    %246 = vector.extract_strided_slice %243 {offsets = [0, 64], sizes = [2, 32], strides = [1, 1]} : vector<2x96xf32> to vector<2x32xf32>
    %247 = vector.extract_strided_slice %237 {offsets = [0, 96], sizes = [2, 32], strides = [1, 1]} : vector<2x128xf32> to vector<2x32xf32>
    %248 = math.tanh %247 : vector<2x32xf32>
    %249 = arith.mulf %245, %232 : vector<2x32xf32>
    %250 = arith.mulf %244, %248 : vector<2x32xf32>
    %251 = arith.addf %249, %250 : vector<2x32xf32>
    %252 = math.tanh %251 : vector<2x32xf32>
    %253 = arith.mulf %246, %252 : vector<2x32xf32>
    %254 = vector.extract_strided_slice %175 {offsets = [8, 0], sizes = [2, 128], strides = [1, 1]} : vector<16x128xf32> to vector<2x128xf32>
    %cst_53 = arith.constant dense<0.000000e+00> : vector<2x128xf32>
    %255 = tpu.matmul %253, %171, %cst_53 {dimension_numbers = #tpu.dot_dimension_numbers<[1], [0], [0], [1], [0, 0, 1, 1], [], []>} : vector<2x32xf32>, vector<32x128xf32>, vector<2x128xf32> -> vector<2x128xf32>
    %256 = arith.addf %254, %255 : vector<2x128xf32>
    %257 = vector.extract_strided_slice %256 {offsets = [0, 0], sizes = [2, 96], strides = [1, 1]} : vector<2x128xf32> to vector<2x96xf32>
    %258 = arith.negf %257 : vector<2x96xf32>
    %259 = math.exp %258 : vector<2x96xf32>
    %cst_54 = arith.constant 1.000000e+00 : f32
    %260 = vector.broadcast %cst_54 : f32 to vector<2x96xf32>
    %261 = arith.addf %260, %259 : vector<2x96xf32>
    %262 = arith.divf %260, %261 : vector<2x96xf32>
    %263 = vector.extract_strided_slice %262 {offsets = [0, 0], sizes = [2, 32], strides = [1, 1]} : vector<2x96xf32> to vector<2x32xf32>
    %264 = vector.extract_strided_slice %262 {offsets = [0, 32], sizes = [2, 32], strides = [1, 1]} : vector<2x96xf32> to vector<2x32xf32>
    %265 = vector.extract_strided_slice %262 {offsets = [0, 64], sizes = [2, 32], strides = [1, 1]} : vector<2x96xf32> to vector<2x32xf32>
    %266 = vector.extract_strided_slice %256 {offsets = [0, 96], sizes = [2, 32], strides = [1, 1]} : vector<2x128xf32> to vector<2x32xf32>
    %267 = math.tanh %266 : vector<2x32xf32>
    %268 = arith.mulf %264, %251 : vector<2x32xf32>
    %269 = arith.mulf %263, %267 : vector<2x32xf32>
    %270 = arith.addf %268, %269 : vector<2x32xf32>
    %271 = math.tanh %270 : vector<2x32xf32>
    %272 = arith.mulf %265, %271 : vector<2x32xf32>
    %273 = vector.extract_strided_slice %175 {offsets = [10, 0], sizes = [2, 128], strides = [1, 1]} : vector<16x128xf32> to vector<2x128xf32>
    %cst_55 = arith.constant dense<0.000000e+00> : vector<2x128xf32>
    %274 = tpu.matmul %272, %171, %cst_55 {dimension_numbers = #tpu.dot_dimension_numbers<[1], [0], [0], [1], [0, 0, 1, 1], [], []>} : vector<2x32xf32>, vector<32x128xf32>, vector<2x128xf32> -> vector<2x128xf32>
    %275 = arith.addf %273, %274 : vector<2x128xf32>
    %276 = vector.extract_strided_slice %275 {offsets = [0, 0], sizes = [2, 96], strides = [1, 1]} : vector<2x128xf32> to vector<2x96xf32>
    %277 = arith.negf %276 : vector<2x96xf32>
    %278 = math.exp %277 : vector<2x96xf32>
    %cst_56 = arith.constant 1.000000e+00 : f32
    %279 = vector.broadcast %cst_56 : f32 to vector<2x96xf32>
    %280 = arith.addf %279, %278 : vector<2x96xf32>
    %281 = arith.divf %279, %280 : vector<2x96xf32>
    %282 = vector.extract_strided_slice %281 {offsets = [0, 0], sizes = [2, 32], strides = [1, 1]} : vector<2x96xf32> to vector<2x32xf32>
    %283 = vector.extract_strided_slice %281 {offsets = [0, 32], sizes = [2, 32], strides = [1, 1]} : vector<2x96xf32> to vector<2x32xf32>
    %284 = vector.extract_strided_slice %281 {offsets = [0, 64], sizes = [2, 32], strides = [1, 1]} : vector<2x96xf32> to vector<2x32xf32>
    %285 = vector.extract_strided_slice %275 {offsets = [0, 96], sizes = [2, 32], strides = [1, 1]} : vector<2x128xf32> to vector<2x32xf32>
    %286 = math.tanh %285 : vector<2x32xf32>
    %287 = arith.mulf %283, %270 : vector<2x32xf32>
    %288 = arith.mulf %282, %286 : vector<2x32xf32>
    %289 = arith.addf %287, %288 : vector<2x32xf32>
    %290 = math.tanh %289 : vector<2x32xf32>
    %291 = arith.mulf %284, %290 : vector<2x32xf32>
    %292 = vector.extract_strided_slice %175 {offsets = [12, 0], sizes = [2, 128], strides = [1, 1]} : vector<16x128xf32> to vector<2x128xf32>
    %cst_57 = arith.constant dense<0.000000e+00> : vector<2x128xf32>
    %293 = tpu.matmul %291, %171, %cst_57 {dimension_numbers = #tpu.dot_dimension_numbers<[1], [0], [0], [1], [0, 0, 1, 1], [], []>} : vector<2x32xf32>, vector<32x128xf32>, vector<2x128xf32> -> vector<2x128xf32>
    %294 = arith.addf %292, %293 : vector<2x128xf32>
    %295 = vector.extract_strided_slice %294 {offsets = [0, 0], sizes = [2, 96], strides = [1, 1]} : vector<2x128xf32> to vector<2x96xf32>
    %296 = arith.negf %295 : vector<2x96xf32>
    %297 = math.exp %296 : vector<2x96xf32>
    %cst_58 = arith.constant 1.000000e+00 : f32
    %298 = vector.broadcast %cst_58 : f32 to vector<2x96xf32>
    %299 = arith.addf %298, %297 : vector<2x96xf32>
    %300 = arith.divf %298, %299 : vector<2x96xf32>
    %301 = vector.extract_strided_slice %300 {offsets = [0, 0], sizes = [2, 32], strides = [1, 1]} : vector<2x96xf32> to vector<2x32xf32>
    %302 = vector.extract_strided_slice %300 {offsets = [0, 32], sizes = [2, 32], strides = [1, 1]} : vector<2x96xf32> to vector<2x32xf32>
    %303 = vector.extract_strided_slice %300 {offsets = [0, 64], sizes = [2, 32], strides = [1, 1]} : vector<2x96xf32> to vector<2x32xf32>
    %304 = vector.extract_strided_slice %294 {offsets = [0, 96], sizes = [2, 32], strides = [1, 1]} : vector<2x128xf32> to vector<2x32xf32>
    %305 = math.tanh %304 : vector<2x32xf32>
    %306 = arith.mulf %302, %289 : vector<2x32xf32>
    %307 = arith.mulf %301, %305 : vector<2x32xf32>
    %308 = arith.addf %306, %307 : vector<2x32xf32>
    %309 = math.tanh %308 : vector<2x32xf32>
    %310 = arith.mulf %303, %309 : vector<2x32xf32>
    %311 = vector.extract_strided_slice %175 {offsets = [14, 0], sizes = [2, 128], strides = [1, 1]} : vector<16x128xf32> to vector<2x128xf32>
    %cst_59 = arith.constant dense<0.000000e+00> : vector<2x128xf32>
    %312 = tpu.matmul %310, %171, %cst_59 {dimension_numbers = #tpu.dot_dimension_numbers<[1], [0], [0], [1], [0, 0, 1, 1], [], []>} : vector<2x32xf32>, vector<32x128xf32>, vector<2x128xf32> -> vector<2x128xf32>
    %313 = arith.addf %311, %312 : vector<2x128xf32>
    %314 = vector.extract_strided_slice %313 {offsets = [0, 0], sizes = [2, 96], strides = [1, 1]} : vector<2x128xf32> to vector<2x96xf32>
    %315 = arith.negf %314 : vector<2x96xf32>
    %316 = math.exp %315 : vector<2x96xf32>
    %cst_60 = arith.constant 1.000000e+00 : f32
    %317 = vector.broadcast %cst_60 : f32 to vector<2x96xf32>
    %318 = arith.addf %317, %316 : vector<2x96xf32>
    %319 = arith.divf %317, %318 : vector<2x96xf32>
    %320 = vector.extract_strided_slice %319 {offsets = [0, 0], sizes = [2, 32], strides = [1, 1]} : vector<2x96xf32> to vector<2x32xf32>
    %321 = vector.extract_strided_slice %319 {offsets = [0, 32], sizes = [2, 32], strides = [1, 1]} : vector<2x96xf32> to vector<2x32xf32>
    %322 = vector.extract_strided_slice %319 {offsets = [0, 64], sizes = [2, 32], strides = [1, 1]} : vector<2x96xf32> to vector<2x32xf32>
    %323 = vector.extract_strided_slice %313 {offsets = [0, 96], sizes = [2, 32], strides = [1, 1]} : vector<2x128xf32> to vector<2x32xf32>
    %324 = math.tanh %323 : vector<2x32xf32>
    %325 = arith.mulf %321, %308 : vector<2x32xf32>
    %326 = arith.mulf %320, %324 : vector<2x32xf32>
    %327 = arith.addf %325, %326 : vector<2x32xf32>
    %328 = math.tanh %327 : vector<2x32xf32>
    %329 = arith.mulf %322, %328 : vector<2x32xf32>
    %cst_61 = arith.constant dense<0.000000e+00> : vector<2xf32>
    %330 = vector.multi_reduction <add>, %329, %cst_61 [1] : vector<2x32xf32> to vector<2xf32>
    %331 = vector.shape_cast %330 : vector<2xf32> to vector<2x1xf32>
    %cst_62 = arith.constant 3.200000e+01 : f32
    %332 = vector.broadcast %cst_62 : f32 to vector<2x1xf32>
    %333 = arith.divf %331, %332 : vector<2x1xf32>
    %334 = vector.broadcast %333 : vector<2x1xf32> to vector<2x32xf32>
    %335 = arith.subf %329, %334 : vector<2x32xf32>
    %336 = arith.mulf %335, %335 : vector<2x32xf32>
    %cst_63 = arith.constant dense<0.000000e+00> : vector<2xf32>
    %337 = vector.multi_reduction <add>, %336, %cst_63 [1] : vector<2x32xf32> to vector<2xf32>
    %338 = vector.shape_cast %337 : vector<2xf32> to vector<2x1xf32>
    %cst_64 = arith.constant 3.200000e+01 : f32
    %339 = vector.broadcast %cst_64 : f32 to vector<2x1xf32>
    %340 = arith.divf %338, %339 : vector<2x1xf32>
    %341 = vector.broadcast %333 : vector<2x1xf32> to vector<2x32xf32>
    %342 = arith.subf %329, %341 : vector<2x32xf32>
    %cst_65 = arith.constant 9.99999974E-6 : f32
    %343 = vector.broadcast %cst_65 : f32 to vector<2x1xf32>
    %344 = arith.addf %340, %343 : vector<2x1xf32>
    %345 = math.rsqrt %344 : vector<2x1xf32>
    %346 = vector.broadcast %345 : vector<2x1xf32> to vector<2x32xf32>
    %347 = arith.mulf %342, %346 : vector<2x32xf32>
    %c0_66 = arith.constant 0 : index
    %c0_67 = arith.constant 0 : index
    %348 = vector.load %arg7[%c0_66, %c0_67] : memref<1x32xf32, #tpu.memory_space<vmem>>, vector<1x32xf32>
    %349 = vector.broadcast %348 : vector<1x32xf32> to vector<2x32xf32>
    %350 = arith.mulf %347, %349 : vector<2x32xf32>
    %c0_68 = arith.constant 0 : index
    %c0_69 = arith.constant 0 : index
    %351 = vector.load %arg8[%c0_68, %c0_69] : memref<1x32xf32, #tpu.memory_space<vmem>>, vector<1x32xf32>
    %352 = vector.broadcast %351 : vector<1x32xf32> to vector<2x32xf32>
    %353 = arith.addf %350, %352 : vector<2x32xf32>
    %c0_70 = arith.constant 0 : index
    %c0_71 = arith.constant 0 : index
    %354 = vector.load %arg9[%c0_70, %c0_71] : memref<32x8xf32, #tpu.memory_space<vmem>>, vector<32x8xf32>
    %cst_72 = arith.constant dense<0.000000e+00> : vector<2x8xf32>
    %355 = tpu.matmul %353, %354, %cst_72 {dimension_numbers = #tpu.dot_dimension_numbers<[1], [0], [0], [1], [0, 0, 1, 1], [], []>} : vector<2x32xf32>, vector<32x8xf32>, vector<2x8xf32> -> vector<2x8xf32>
    %c0_73 = arith.constant 0 : index
    %c0_74 = arith.constant 0 : index
    %356 = vector.load %arg10[%c0_73, %c0_74] : memref<1x8xf32, #tpu.memory_space<vmem>>, vector<1x8xf32>
    %357 = vector.broadcast %356 : vector<1x8xf32> to vector<2x8xf32>
    %358 = arith.addf %355, %357 : vector<2x8xf32>
    %359 = vector.shape_cast %358 : vector<2x8xf32> to vector<2x1x8xf32>
    %360 = vector.shape_cast %358 : vector<2x8xf32> to vector<2x8x1xf32>
    %361 = vector.broadcast %359 : vector<2x1x8xf32> to vector<2x8x8xf32>
    %362 = vector.broadcast %360 : vector<2x8x1xf32> to vector<2x8x8xf32>
    %363 = arith.cmpf oge, %361, %362 : vector<2x8x8xf32>
    %364 = arith.extui %363 : vector<2x8x8xi1> to vector<2x8x8xi32>
    %365 = arith.sitofp %364 : vector<2x8x8xi32> to vector<2x8x8xf32>
    %cst_75 = arith.constant dense<0.000000e+00> : vector<2x8xf32>
    %366 = vector.multi_reduction <add>, %365, %cst_75 [2] : vector<2x8x8xf32> to vector<2x8xf32>
    %367 = vector.shape_cast %358 : vector<2x8xf32> to vector<2x1x8xf32>
    %368 = vector.broadcast %367 : vector<2x1x8xf32> to vector<2x8x8xf32>
    %369 = arith.mulf %365, %368 : vector<2x8x8xf32>
    %cst_76 = arith.constant dense<0.000000e+00> : vector<2x8xf32>
    %370 = vector.multi_reduction <add>, %369, %cst_76 [2] : vector<2x8x8xf32> to vector<2x8xf32>
    %371 = arith.mulf %366, %358 : vector<2x8xf32>
    %cst_77 = arith.constant 1.000000e+00 : f32
    %372 = vector.broadcast %cst_77 : f32 to vector<2x8xf32>
    %373 = arith.addf %372, %371 : vector<2x8xf32>
    %374 = arith.cmpf ogt, %373, %370 : vector<2x8xf32>
    %375 = arith.extui %374 : vector<2x8xi1> to vector<2x8xi32>
    %376 = arith.sitofp %375 : vector<2x8xi32> to vector<2x8xf32>
    %cst_78 = arith.constant dense<0.000000e+00> : vector<2xf32>
    %377 = vector.multi_reduction <add>, %376, %cst_78 [1] : vector<2x8xf32> to vector<2xf32>
    %378 = vector.shape_cast %377 : vector<2xf32> to vector<2x1xf32>
    %379 = arith.mulf %358, %376 : vector<2x8xf32>
    %cst_79 = arith.constant dense<0.000000e+00> : vector<2xf32>
    %380 = vector.multi_reduction <add>, %379, %cst_79 [1] : vector<2x8xf32> to vector<2xf32>
    %381 = vector.shape_cast %380 : vector<2xf32> to vector<2x1xf32>
    %cst_80 = arith.constant 1.000000e+00 : f32
    %382 = vector.broadcast %cst_80 : f32 to vector<2x1xf32>
    %383 = arith.subf %381, %382 : vector<2x1xf32>
    %384 = arith.divf %383, %378 : vector<2x1xf32>
    %385 = vector.broadcast %384 : vector<2x1xf32> to vector<2x8xf32>
    %386 = arith.subf %358, %385 : vector<2x8xf32>
    %cst_81 = arith.constant 0.000000e+00 : f32
    %387 = vector.broadcast %cst_81 : f32 to vector<2x8xf32>
    %388 = arith.maximumf %386, %387 : vector<2x8xf32>
    %c0_82 = arith.constant 0 : index
    %c0_83 = arith.constant 0 : index
    %389 = vector.load %arg11[%c0_82, %c0_83] : memref<2x8xf32, #tpu.memory_space<vmem>>, vector<2x8xf32>
    tpu.vector_store %arg11[%c0_82, %c0_83], %388 {strides = array<i32>} : memref<2x8xf32, #tpu.memory_space<vmem>>, vector<2x8xf32>,
    return
  }
}

</mosaic_0001>

<llo_original>
// kernel: lstm_model_forward.1
$region0: #{lstm_model_forward.1}
  #allocation0 [shape = 'u32[]', space=smem, size = 0x4, offset = 0x4, fixed_abs, tag = 'smem constant byte address 0x4 - core index']
  #allocation1 [shape = 'u32[144,128]{1,0:T(1,128)}', space=vmem, size = 0x12000, scoped, tag = 'internal scratch']
  #allocation2 [shape = 'f32[16,32]{1,0:T(8,128)}', space=vmem, size = 0x2000, scoped, tag = 'scratch operand']
  %s0 = inlined_call_operand.vmem [shape: f32[16,4], index: 0, kind: input, shape index: {}]
  %s1 = inlined_call_operand.vmem [shape: f32[4,128], index: 1, kind: input, shape index: {}]
  %s2 = inlined_call_operand.vmem [shape: f32[32,128], index: 2, kind: input, shape index: {}]
  %s3 = inlined_call_operand.vmem [shape: f32[1,128], index: 3, kind: input, shape index: {}]
  %s4 = inlined_call_operand.vmem [shape: f32[32,128], index: 4, kind: input, shape index: {}]
  %s5 = inlined_call_operand.vmem [shape: f32[32,128], index: 5, kind: input, shape index: {}]
  %s6 = inlined_call_operand.vmem [shape: f32[1,128], index: 6, kind: input, shape index: {}]
  %s7 = inlined_call_operand.vmem [shape: f32[1,32], index: 7, kind: input, shape index: {}]
  %s8 = inlined_call_operand.vmem [shape: f32[1,32], index: 8, kind: input, shape index: {}]
  %s9 = inlined_call_operand.vmem [shape: f32[32,8], index: 9, kind: input, shape index: {}]
  %s10 = inlined_call_operand.vmem [shape: f32[1,8], index: 10, kind: input, shape index: {}]
  %s11 = inlined_call_operand.hbm [shape: f32[2,8], index: 11, kind: output, shape index: {}]
  %s12 = sld [smem:[#allocation0]]
  $region54: #{lstm_model_forward.1} parent=0
    _
  %s14 = ssub.s32 1, %s12
  %s15 = scalar_select 0, %s14, %s12
  $region1: #{lstm_model_forward.1} parent=0
    #allocation3 [shape = 'u8[1024]{0}', space=vmem, size = 0x400, scoped, tag = 'output window, operand 0, single buffered']
    #allocation4 [shape = 's32[1]{0}', space=sflag, size = 0x4, scoped, tag = 'scoped memory for lstm_model_forward.1']
    %16 = vsyncpa [#allocation4], 0
    // Predicated region
    $region2: #{lstm_model_forward.1} parent=1 // pred_check
      _
    $region3: #{lstm_model_forward.1} parent=1 // pred_check_branch
      %18 = sbr.rel (0) target = $region5
    $region4: #{lstm_model_forward.1} parent=1 // pred_region
      _
    $region5: #{lstm_model_forward.1} parent=1 // pred_fallthru
      _
    // Predicated region
    $region6: #{lstm_model_forward.1} parent=1 // pred_check
      _
    $region7: #{lstm_model_forward.1} parent=1 // pred_check_branch
      %20 = sbr.rel (0) target = $region9
    $region8: #{lstm_model_forward.1} parent=1 // pred_region
      _
    $region9: #{lstm_model_forward.1} parent=1 // pred_fallthru
      _
    // Predicated region
    $region10: #{lstm_model_forward.1} parent=1 // pred_check
      _
    $region11: #{lstm_model_forward.1} parent=1 // pred_check_branch
      %22 = sbr.rel (0) target = $region13
    $region12: #{lstm_model_forward.1} parent=1 // pred_region
      _
    $region13: #{lstm_model_forward.1} parent=1 // pred_fallthru
      _
    // Predicated region
    $region14: #{lstm_model_forward.1} parent=1 // pred_check
      _
    $region15: #{lstm_model_forward.1} parent=1 // pred_check_branch
      %24 = sbr.rel (0) target = $region17
    $region16: #{lstm_model_forward.1} parent=1 // pred_region
      _
    $region17: #{lstm_model_forward.1} parent=1 // pred_fallthru
      _
    // Predicated region
    $region18: #{lstm_model_forward.1} parent=1 // pred_check
      _
    $region19: #{lstm_model_forward.1} parent=1 // pred_check_branch
      %26 = sbr.rel (0) target = $region21
    $region20: #{lstm_model_forward.1} parent=1 // pred_region
      _
    $region21: #{lstm_model_forward.1} parent=1 // pred_fallthru
      _
    // Predicated region
    $region22: #{lstm_model_forward.1} parent=1 // pred_check
      _
    $region23: #{lstm_model_forward.1} parent=1 // pred_check_branch
      %28 = sbr.rel (0) target = $region25
    $region24: #{lstm_model_forward.1} parent=1 // pred_region
      _
    $region25: #{lstm_model_forward.1} parent=1 // pred_fallthru
      _
    // Predicated region
    $region26: #{lstm_model_forward.1} parent=1 // pred_check
      _
    $region27: #{lstm_model_forward.1} parent=1 // pred_check_branch
      %30 = sbr.rel (0) target = $region29
    $region28: #{lstm_model_forward.1} parent=1 // pred_region
      _
    $region29: #{lstm_model_forward.1} parent=1 // pred_fallthru
      _
    // Predicated region
    $region30: #{lstm_model_forward.1} parent=1 // pred_check
      _
    $region31: #{lstm_model_forward.1} parent=1 // pred_check_branch
      %32 = sbr.rel (0) target = $region33
    $region32: #{lstm_model_forward.1} parent=1 // pred_region
      _
    $region33: #{lstm_model_forward.1} parent=1 // pred_fallthru
      _
    // Predicated region
    $region34: #{lstm_model_forward.1} parent=1 // pred_check
      _
    $region35: #{lstm_model_forward.1} parent=1 // pred_check_branch
      %34 = sbr.rel (0) target = $region37
    $region36: #{lstm_model_forward.1} parent=1 // pred_region
      _
    $region37: #{lstm_model_forward.1} parent=1 // pred_fallthru
      _
    // Predicated region
    $region38: #{lstm_model_forward.1} parent=1 // pred_check
      _
    $region39: #{lstm_model_forward.1} parent=1 // pred_check_branch
      %36 = sbr.rel (0) target = $region41
    $region40: #{lstm_model_forward.1} parent=1 // pred_region
      _
    $region41: #{lstm_model_forward.1} parent=1 // pred_fallthru
      _
    // Predicated region
    $region42: #{lstm_model_forward.1} parent=1 // pred_check
      _
    $region43: #{lstm_model_forward.1} parent=1 // pred_check_branch
      %38 = sbr.rel (0) target = $region45
    $region44: #{lstm_model_forward.1} parent=1 // pred_region
      _
    $region45: #{lstm_model_forward.1} parent=1 // pred_fallthru
      _
    %v39 = vld [vmem:[%s0] sm:$0xff]
    %v40 = vld [vmem:[%s0 + $0x8] sm:$0xff]
    %v41 = vld [vmem:[%s1] sm:$0xf]
    %v42 = vld [vmem:[%s2] sm:$0xff]
    %v43 = vld [vmem:[%s2 + $0x8] sm:$0xff]
    %v44 = vld [vmem:[%s2 + $0x10] sm:$0xff]
    %v45 = vld [vmem:[%s2 + $0x18] sm:$0xff]
    %v46 = vld [vmem:[%s3] sm:$0x1]
    %v48 = vlaneseq
    %v49 = vshrl.u32 %v48, 7
    %v50 = vsub.s32 0, %v49
    %v51 = vrot.slane %v46, %v50
    %vm53 = vcmask 31744
    %v55 = vsel %vm53, %v39, 0
    %v58 = vsel %vm53, %v40, 0
    %vm60 = vcmask 1043456
    %v62 = vsel %vm60, %v41, 0
    %64 = vmatprep.subr.mxu0 0.0
    %65 = vmatpush1.msra.mxu0 %v62
    %66 = vmatprep.subr.mxu0 0.0
    %67 = vmatpush1.msra.mxu0 0.0
    %68 = vmatprep.subr.mxu0 0.0
    %69 = vmatpush1.msra.mxu0 0.0
    %70 = vmatprep.subr.mxu0 0.0
    %71 = vmatpush1.msra.mxu0 0.0
    %72 = vmatprep.subr.mxu0 0.0
    %73 = vmatpush1.msra.mxu0 0.0
    %74 = vmatprep.subr.mxu0 0.0
    %75 = vmatpush1.msra.mxu0 0.0
    %76 = vmatprep.subr.mxu0 0.0
    %77 = vmatpush1.msra.mxu0 0.0
    %78 = vmatprep.subr.mxu0 0.0
    %79 = vmatpush1.msra.mxu0 0.0
    %80 = vmatprep.subr.mxu0 0.0
    %81 = vmatpush1.msra.mxu0 0.0
    %82 = vmatprep.subr.mxu0 0.0
    %83 = vmatpush1.msra.mxu0 0.0
    %84 = vmatprep.subr.mxu0 0.0
    %85 = vmatpush1.msra.mxu0 0.0
    %86 = vmatprep.subr.mxu0 0.0
    %87 = vmatpush1.msra.mxu0 0.0
    %88 = vmatprep.subr.mxu0 0.0
    %89 = vmatpush1.msra.mxu0 0.0
    %90 = vmatprep.subr.mxu0 0.0
    %91 = vmatpush1.msra.mxu0 0.0
    %92 = vmatprep.subr.mxu0 0.0
    %93 = vmatpush1.msra.mxu0 0.0
    %94 = vmatprep.subr.mxu0 0.0
    %95 = vmatpush1.msra.mxu0 0.0
    %96 = vmatprep.subr.mxu0 0.0
    %97 = vmatpush1.msra.mxu0 0.0
    %98 = vmatprep.subr.mxu0 0.0
    %99 = vmatpush1.msra.mxu0 0.0
    %100 = vmatprep.subr.mxu0 0.0
    %101 = vmatpush1.msra.mxu0 0.0
    %102 = vmatprep.subr.mxu0 0.0
    %103 = vmatpush1.msra.mxu0 0.0
    %104 = vmatprep.subr.mxu0 0.0
    %105 = vmatpush1.msra.mxu0 0.0
    %106 = vmatprep.subr.mxu0 0.0
    %107 = vmatpush1.msra.mxu0 0.0
    %108 = vmatprep.subr.mxu0 0.0
    %109 = vmatpush1.msra.mxu0 0.0
    %110 = vmatprep.subr.mxu0 0.0
    %111 = vmatpush1.msra.mxu0 0.0
    %112 = vmatprep.subr.mxu0 0.0
    %113 = vmatpush1.msra.mxu0 0.0
    %114 = vmatprep.subr.mxu0 0.0
    %115 = vmatpush1.msra.mxu0 0.0
    %116 = vmatprep.subr.mxu0 0.0
    %117 = vmatpush1.msra.mxu0 0.0
    %118 = vmatprep.subr.mxu0 0.0
    %119 = vmatpush1.msra.mxu0 0.0
    %120 = vmatprep.subr.mxu0 0.0
    %121 = vmatpush1.msra.mxu0 0.0
    %122 = vmatprep.subr.mxu0 0.0
    %123 = vmatpush1.msra.mxu0 0.0
    %124 = vmatprep.subr.mxu0 0.0
    %125 = vmatpush1.msra.mxu0 0.0
    %126 = vmatprep.subr.mxu0 0.0
    %127 = vmatpush1.msra.mxu0 0.0
    %128 = vmatprep.mubr.f32.mxu0 0.0
    %129 = vmatmul.mubr.f32.gmra.mrb[0].mxu0 %v55
    %v130 = vpop.f32.mrb[0].mxu0
    %v131 = vadd.f32 %v51, %v130
    %v132 = vpop.f32.mrb[0].mxu0
    %133 = vmatprep.mubr.f32.mxu0 0.0
    %134 = vmatmul.mubr.f32.gmra.mrb[0].mxu0 %v58
    %v135 = vpop.f32.mrb[0].mxu0
    %v136 = vadd.f32 %v51, %v135
    %v137 = vpop.f32.mrb[0].mxu0
    %138 = vdwg.mxu0
    %vm139 = vcmask 261120
    %v141 = vsel %vm139, 0.0, 0
    %143 = vmatprep.subr.mxu0 0.0
    %144 = vmatpush1.msra.mxu0 %v42
    %145 = vmatprep.subr.mxu0 0.0
    %146 = vmatpush1.msra.mxu0 %v43
    %147 = vmatprep.subr.mxu0 0.0
    %148 = vmatpush1.msra.mxu0 %v44
    %149 = vmatprep.subr.mxu0 0.0
    %150 = vmatpush1.msra.mxu0 %v45
    %151 = vmatprep.subr.mxu0 0.0
    %152 = vmatpush1.msra.mxu0 0.0
    %153 = vmatprep.subr.mxu0 0.0
    %154 = vmatpush1.msra.mxu0 0.0
    %155 = vmatprep.subr.mxu0 0.0
    %156 = vmatpush1.msra.mxu0 0.0
    %157 = vmatprep.subr.mxu0 0.0
    %158 = vmatpush1.msra.mxu0 0.0
    %159 = vmatprep.subr.mxu0 0.0
    %160 = vmatpush1.msra.mxu0 0.0
    %161 = vmatprep.subr.mxu0 0.0
    %162 = vmatpush1.msra.mxu0 0.0
    %163 = vmatprep.subr.mxu0 0.0
    %164 = vmatpush1.msra.mxu0 0.0
    %165 = vmatprep.subr.mxu0 0.0
    %166 = vmatpush1.msra.mxu0 0.0
    %167 = vmatprep.subr.mxu0 0.0
    %168 = vmatpush1.msra.mxu0 0.0
    %169 = vmatprep.subr.mxu0 0.0
    %170 = vmatpush1.msra.mxu0 0.0
    %171 = vmatprep.subr.mxu0 0.0
    %172 = vmatpush1.msra.mxu0 0.0
    %173 = vmatprep.subr.mxu0 0.0
    %174 = vmatpush1.msra.mxu0 0.0
    %175 = vmatprep.subr.mxu0 0.0
    %176 = vmatpush1.msra.mxu0 0.0
    %177 = vmatprep.subr.mxu0 0.0
    %178 = vmatpush1.msra.mxu0 0.0
    %179 = vmatprep.subr.mxu0 0.0
    %180 = vmatpush1.msra.mxu0 0.0
    %181 = vmatprep.subr.mxu0 0.0
    %182 = vmatpush1.msra.mxu0 0.0
    %183 = vmatprep.subr.mxu0 0.0
    %184 = vmatpush1.msra.mxu0 0.0
    %185 = vmatprep.subr.mxu0 0.0
    %186 = vmatpush1.msra.mxu0 0.0
    %187 = vmatprep.subr.mxu0 0.0
    %188 = vmatpush1.msra.mxu0 0.0
    %189 = vmatprep.subr.mxu0 0.0
    %190 = vmatpush1.msra.mxu0 0.0
    %191 = vmatprep.subr.mxu0 0.0
    %192 = vmatpush1.msra.mxu0 0.0
    %193 = vmatprep.subr.mxu0 0.0
    %194 = vmatpush1.msra.mxu0 0.0
    %195 = vmatprep.subr.mxu0 0.0
    %196 = vmatpush1.msra.mxu0 0.0
    %197 = vmatprep.subr.mxu0 0.0
    %198 = vmatpush1.msra.mxu0 0.0
    %199 = vmatprep.subr.mxu0 0.0
    %200 = vmatpush1.msra.mxu0 0.0
    %201 = vmatprep.subr.mxu0 0.0
    %202 = vmatpush1.msra.mxu0 0.0
    %203 = vmatprep.subr.mxu0 0.0
    %204 = vmatpush1.msra.mxu0 0.0
    %205 = vmatprep.subr.mxu0 0.0
    %206 = vmatpush1.msra.mxu0 0.0
    %207 = vmatprep.mubr.f32.mxu0 0.0
    %208 = vmatmul.mubr.f32.gmra.mrb[0].mxu0 %v141
    %v209 = vpop.f32.mrb[0].mxu0
    %v210 = vadd.f32 0.0, %v209
    %v211 = vpop.f32.mrb[0].mxu0
    %212 = vdwg.mxu0
    %v213 = vadd.f32 %v131, %v210
    %v214 = vxor.u32 %v213, 2147483648
    %v215 = vmul.f32 %v214, 1.442695
    %v216 = vpow.pop %v215
    %v217 = vadd.f32 %v216, 1.0
    %v218 = vrcp.pop %v217
    %v219 = vmul.f32 1.0, %v218
    %v220 = vtanh.pop %v213
    %v221 = vmul.f32 %v219, 0.0
    %223 = vrot.lane.b32.xlu0 %v220, 32
    %v224 = vpop.permute.xlu0 %223
    %v226 = vmul.f32 %v219, %v224
    %228 = vrot.lane.b32.xlu0 %v226, 32
    %v229 = vpop.permute.xlu0 %228
    %v231 = vadd.f32 %v221, %v229
    %v232 = vtanh.pop %v231
    %234 = vrot.lane.b32.xlu0 %v232, 32
    %v235 = vpop.permute.xlu0 %234
    %v237 = vmul.f32 %v219, %v235
    %239 = vrot.lane.b32.xlu0 %v237, 64
    %v240 = vpop.permute.xlu0 %239
    %vm242 = vcmask 254976
    %243 = vst.msk [vmem:[#allocation2] sm:$0x3] %vm242, %v240
    %v244 = vsel %vm139, %v240, 0
    %246 = vmatprep.subr.mxu0 0.0
    %247 = vmatpush1.msra.mxu0 %v42
    %248 = vmatprep.subr.mxu0 0.0
    %249 = vmatpush1.msra.mxu0 %v43
    %250 = vmatprep.subr.mxu0 0.0
    %251 = vmatpush1.msra.mxu0 %v44
    %252 = vmatprep.subr.mxu0 0.0
    %253 = vmatpush1.msra.mxu0 %v45
    %254 = vmatprep.subr.mxu0 0.0
    %255 = vmatpush1.msra.mxu0 0.0
    %256 = vmatprep.subr.mxu0 0.0
    %257 = vmatpush1.msra.mxu0 0.0
    %258 = vmatprep.subr.mxu0 0.0
    %259 = vmatpush1.msra.mxu0 0.0
    %260 = vmatprep.subr.mxu0 0.0
    %261 = vmatpush1.msra.mxu0 0.0
    %262 = vmatprep.subr.mxu0 0.0
    %263 = vmatpush1.msra.mxu0 0.0
    %264 = vmatprep.subr.mxu0 0.0
    %265 = vmatpush1.msra.mxu0 0.0
    %266 = vmatprep.subr.mxu0 0.0
    %267 = vmatpush1.msra.mxu0 0.0
    %268 = vmatprep.subr.mxu0 0.0
    %269 = vmatpush1.msra.mxu0 0.0
    %270 = vmatprep.subr.mxu0 0.0
    %271 = vmatpush1.msra.mxu0 0.0
    %272 = vmatprep.subr.mxu0 0.0
    %273 = vmatpush1.msra.mxu0 0.0
    %274 = vmatprep.subr.mxu0 0.0
    %275 = vmatpush1.msra.mxu0 0.0
    %276 = vmatprep.subr.mxu0 0.0
    %277 = vmatpush1.msra.mxu0 0.0
    %278 = vmatprep.subr.mxu0 0.0
    %279 = vmatpush1.msra.mxu0 0.0
    %280 = vmatprep.subr.mxu0 0.0
    %281 = vmatpush1.msra.mxu0 0.0
    %282 = vmatprep.subr.mxu0 0.0
    %283 = vmatpush1.msra.mxu0 0.0
    %284 = vmatprep.subr.mxu0 0.0
    %285 = vmatpush1.msra.mxu0 0.0
    %286 = vmatprep.subr.mxu0 0.0
    %287 = vmatpush1.msra.mxu0 0.0
    %288 = vmatprep.subr.mxu0 0.0
    %289 = vmatpush1.msra.mxu0 0.0
    %290 = vmatprep.subr.mxu0 0.0
    %291 = vmatpush1.msra.mxu0 0.0
    %292 = vmatprep.subr.mxu0 0.0
    %293 = vmatpush1.msra.mxu0 0.0
    %294 = vmatprep.subr.mxu0 0.0
    %295 = vmatpush1.msra.mxu0 0.0
    %296 = vmatprep.subr.mxu0 0.0
    %297 = vmatpush1.msra.mxu0 0.0
    %298 = vmatprep.subr.mxu0 0.0
    %299 = vmatpush1.msra.mxu0 0.0
    %300 = vmatprep.subr.mxu0 0.0
    %301 = vmatpush1.msra.mxu0 0.0
    %302 = vmatprep.subr.mxu0 0.0
    %303 = vmatpush1.msra.mxu0 0.0
    %304 = vmatprep.subr.mxu0 0.0
    %305 = vmatpush1.msra.mxu0 0.0
    %306 = vmatprep.subr.mxu0 0.0
    %307 = vmatpush1.msra.mxu0 0.0
    %308 = vmatprep.subr.mxu0 0.0
    %309 = vmatpush1.msra.mxu0 0.0
    %310 = vmatprep.mubr.f32.mxu0 0.0
    %311 = vmatmul.mubr.f32.gmra.mrb[0].mxu0 %v244
    %v312 = vpop.f32.mrb[0].mxu0
    %v313 = vadd.f32 0.0, %v312
    %v314 = vpop.f32.mrb[0].mxu0
    %315 = vdwg.mxu0
    %v317 = vrot.slane %v313, 6
    %v319 = vadd.f32 %v131, %v317
    %v320 = vxor.u32 %v319, 2147483648
    %v321 = vmul.f32 %v320, 1.442695
    %v322 = vpow.pop %v321
    %v323 = vadd.f32 %v322, 1.0
    %v324 = vrcp.pop %v323
    %v325 = vmul.f32 1.0, %v324
    %v326 = vtanh.pop %v319
    %v328 = vrot.slane %v231, 6
    %v330 = vmul.f32 %v325, %v328
    %332 = vrot.lane.b32.xlu0 %v326, 32
    %v333 = vpop.permute.xlu0 %332
    %v335 = vmul.f32 %v325, %v333
    %337 = vrot.lane.b32.xlu0 %v335, 32
    %v338 = vpop.permute.xlu0 %337
    %v340 = vadd.f32 %v330, %v338
    %v341 = vtanh.pop %v340
    %343 = vrot.lane.b32.xlu0 %v341, 32
    %v344 = vpop.permute.xlu0 %343
    %v346 = vmul.f32 %v325, %v344
    %348 = vrot.lane.b32.xlu0 %v346, 64
    %v349 = vpop.permute.xlu0 %348
    %vm351 = vcmask 257026
    %352 = vst.msk [vmem:[#allocation2] sm:$0xc] %vm351, %v349
    %v353 = vrot.slane %v346, 2
    %354 = vrot.lane.b32.xlu0 %v353, 64
    %v355 = vpop.permute.xlu0 %354
    %v356 = vsel %vm139, %v355, 0
    %358 = vmatprep.subr.mxu0 0.0
    %359 = vmatpush1.msra.mxu0 %v42
    %360 = vmatprep.subr.mxu0 0.0
    %361 = vmatpush1.msra.mxu0 %v43
    %362 = vmatprep.subr.mxu0 0.0
    %363 = vmatpush1.msra.mxu0 %v44
    %364 = vmatprep.subr.mxu0 0.0
    %365 = vmatpush1.msra.mxu0 %v45
    %366 = vmatprep.subr.mxu0 0.0
    %367 = vmatpush1.msra.mxu0 0.0
    %368 = vmatprep.subr.mxu0 0.0
    %369 = vmatpush1.msra.mxu0 0.0
    %370 = vmatprep.subr.mxu0 0.0
    %371 = vmatpush1.msra.mxu0 0.0
    %372 = vmatprep.subr.mxu0 0.0
    %373 = vmatpush1.msra.mxu0 0.0
    %374 = vmatprep.subr.mxu0 0.0
    %375 = vmatpush1.msra.mxu0 0.0
    %376 = vmatprep.subr.mxu0 0.0
    %377 = vmatpush1.msra.mxu0 0.0
    %378 = vmatprep.subr.mxu0 0.0
    %379 = vmatpush1.msra.mxu0 0.0
    %380 = vmatprep.subr.mxu0 0.0
    %381 = vmatpush1.msra.mxu0 0.0
    %382 = vmatprep.subr.mxu0 0.0
    %383 = vmatpush1.msra.mxu0 0.0
    %384 = vmatprep.subr.mxu0 0.0
    %385 = vmatpush1.msra.mxu0 0.0
    %386 = vmatprep.subr.mxu0 0.0
    %387 = vmatpush1.msra.mxu0 0.0
    %388 = vmatprep.subr.mxu0 0.0
    %389 = vmatpush1.msra.mxu0 0.0
    %390 = vmatprep.subr.mxu0 0.0
    %391 = vmatpush1.msra.mxu0 0.0
    %392 = vmatprep.subr.mxu0 0.0
    %393 = vmatpush1.msra.mxu0 0.0
    %394 = vmatprep.subr.mxu0 0.0
    %395 = vmatpush1.msra.mxu0 0.0
    %396 = vmatprep.subr.mxu0 0.0
    %397 = vmatpush1.msra.mxu0 0.0
    %398 = vmatprep.subr.mxu0 0.0
    %399 = vmatpush1.msra.mxu0 0.0
    %400 = vmatprep.subr.mxu0 0.0
    %401 = vmatpush1.msra.mxu0 0.0
    %402 = vmatprep.subr.mxu0 0.0
    %403 = vmatpush1.msra.mxu0 0.0
    %404 = vmatprep.subr.mxu0 0.0
    %405 = vmatpush1.msra.mxu0 0.0
    %406 = vmatprep.subr.mxu0 0.0
    %407 = vmatpush1.msra.mxu0 0.0
    %408 = vmatprep.subr.mxu0 0.0
    %409 = vmatpush1.msra.mxu0 0.0
    %410 = vmatprep.subr.mxu0 0.0
    %411 = vmatpush1.msra.mxu0 0.0
    %412 = vmatprep.subr.mxu0 0.0
    %413 = vmatpush1.msra.mxu0 0.0
    %414 = vmatprep.subr.mxu0 0.0
    %415 = vmatpush1.msra.mxu0 0.0
    %416 = vmatprep.subr.mxu0 0.0
    %417 = vmatpush1.msra.mxu0 0.0
    %418 = vmatprep.subr.mxu0 0.0
    %419 = vmatpush1.msra.mxu0 0.0
    %420 = vmatprep.subr.mxu0 0.0
    %421 = vmatpush1.msra.mxu0 0.0
    %422 = vmatprep.mubr.f32.mxu0 0.0
    %423 = vmatmul.mubr.f32.gmra.mrb[0].mxu0 %v356
    %v424 = vpop.f32.mrb[0].mxu0
    %v425 = vadd.f32 0.0, %v424
    %v426 = vpop.f32.mrb[0].mxu0
    %427 = vdwg.mxu0
    %v429 = vrot.slane %v425, 4
    %v431 = vadd.f32 %v131, %v429
    %v432 = vxor.u32 %v431, 2147483648
    %v433 = vmul.f32 %v432, 1.442695
    %v434 = vpow.pop %v433
    %v435 = vadd.f32 %v434, 1.0
    %v436 = vrcp.pop %v435
    %v437 = vmul.f32 1.0, %v436
    %v438 = vtanh.pop %v431
    %v440 = vrot.slane %v340, 6
    %v442 = vmul.f32 %v437, %v440
    %444 = vrot.lane.b32.xlu0 %v438, 32
    %v445 = vpop.permute.xlu0 %444
    %v447 = vmul.f32 %v437, %v445
    %449 = vrot.lane.b32.xlu0 %v447, 32
    %v450 = vpop.permute.xlu0 %449
    %v452 = vadd.f32 %v442, %v450
    %v453 = vtanh.pop %v452
    %455 = vrot.lane.b32.xlu0 %v453, 32
    %v456 = vpop.permute.xlu0 %455
    %v458 = vmul.f32 %v437, %v456
    %460 = vrot.lane.b32.xlu0 %v458, 64
    %v461 = vpop.permute.xlu0 %460
    %vm463 = vcmask 259076
    %464 = vst.msk [vmem:[#allocation2] sm:$0x30] %vm463, %v461
    %v465 = vrot.slane %v458, 4
    %466 = vrot.lane.b32.xlu0 %v465, 64
    %v467 = vpop.permute.xlu0 %466
    %v468 = vsel %vm139, %v467, 0
    %470 = vmatprep.subr.mxu0 0.0
    %471 = vmatpush1.msra.mxu0 %v42
    %472 = vmatprep.subr.mxu0 0.0
    %473 = vmatpush1.msra.mxu0 %v43
    %474 = vmatprep.subr.mxu0 0.0
    %475 = vmatpush1.msra.mxu0 %v44
    %476 = vmatprep.subr.mxu0 0.0
    %477 = vmatpush1.msra.mxu0 %v45
    %478 = vmatprep.subr.mxu0 0.0
    %479 = vmatpush1.msra.mxu0 0.0
    %480 = vmatprep.subr.mxu0 0.0
    %481 = vmatpush1.msra.mxu0 0.0
    %482 = vmatprep.subr.mxu0 0.0
    %483 = vmatpush1.msra.mxu0 0.0
    %484 = vmatprep.subr.mxu0 0.0
    %485 = vmatpush1.msra.mxu0 0.0
    %486 = vmatprep.subr.mxu0 0.0
    %487 = vmatpush1.msra.mxu0 0.0
    %488 = vmatprep.subr.mxu0 0.0
    %489 = vmatpush1.msra.mxu0 0.0
    %490 = vmatprep.subr.mxu0 0.0
    %491 = vmatpush1.msra.mxu0 0.0
    %492 = vmatprep.subr.mxu0 0.0
    %493 = vmatpush1.msra.mxu0 0.0
    %494 = vmatprep.subr.mxu0 0.0
    %495 = vmatpush1.msra.mxu0 0.0
    %496 = vmatprep.subr.mxu0 0.0
    %497 = vmatpush1.msra.mxu0 0.0
    %498 = vmatprep.subr.mxu0 0.0
    %499 = vmatpush1.msra.mxu0 0.0
    %500 = vmatprep.subr.mxu0 0.0
    %501 = vmatpush1.msra.mxu0 0.0
    %502 = vmatprep.subr.mxu0 0.0
    %503 = vmatpush1.msra.mxu0 0.0
    %504 = vmatprep.subr.mxu0 0.0
    %505 = vmatpush1.msra.mxu0 0.0
    %506 = vmatprep.subr.mxu0 0.0
    %507 = vmatpush1.msra.mxu0 0.0
    %508 = vmatprep.subr.mxu0 0.0
    %509 = vmatpush1.msra.mxu0 0.0
    %510 = vmatprep.subr.mxu0 0.0
    %511 = vmatpush1.msra.mxu0 0.0
    %512 = vmatprep.subr.mxu0 0.0
    %513 = vmatpush1.msra.mxu0 0.0
    %514 = vmatprep.subr.mxu0 0.0
    %515 = vmatpush1.msra.mxu0 0.0
    %516 = vmatprep.subr.mxu0 0.0
    %517 = vmatpush1.msra.mxu0 0.0
    %518 = vmatprep.subr.mxu0 0.0
    %519 = vmatpush1.msra.mxu0 0.0
    %520 = vmatprep.subr.mxu0 0.0
    %521 = vmatpush1.msra.mxu0 0.0
    %522 = vmatprep.subr.mxu0 0.0
    %523 = vmatpush1.msra.mxu0 0.0
    %524 = vmatprep.subr.mxu0 0.0
    %525 = vmatpush1.msra.mxu0 0.0
    %526 = vmatprep.subr.mxu0 0.0
    %527 = vmatpush1.msra.mxu0 0.0
    %528 = vmatprep.subr.mxu0 0.0
    %529 = vmatpush1.msra.mxu0 0.0
    %530 = vmatprep.subr.mxu0 0.0
    %531 = vmatpush1.msra.mxu0 0.0
    %532 = vmatprep.subr.mxu0 0.0
    %533 = vmatpush1.msra.mxu0 0.0
    %534 = vmatprep.mubr.f32.mxu0 0.0
    %535 = vmatmul.mubr.f32.gmra.mrb[0].mxu0 %v468
    %v536 = vpop.f32.mrb[0].mxu0
    %v537 = vadd.f32 0.0, %v536
    %v538 = vpop.f32.mrb[0].mxu0
    %539 = vdwg.mxu0
    %v541 = vrot.slane %v537, 2
    %v543 = vadd.f32 %v131, %v541
    %v544 = vxor.u32 %v543, 2147483648
    %v545 = vmul.f32 %v544, 1.442695
    %v546 = vpow.pop %v545
    %v547 = vadd.f32 %v546, 1.0
    %v548 = vrcp.pop %v547
    %v549 = vmul.f32 1.0, %v548
    %v550 = vtanh.pop %v543
    %v552 = vrot.slane %v452, 6
    %v554 = vmul.f32 %v549, %v552
    %556 = vrot.lane.b32.xlu0 %v550, 32
    %v557 = vpop.permute.xlu0 %556
    %v559 = vmul.f32 %v549, %v557
    %561 = vrot.lane.b32.xlu0 %v559, 32
    %v562 = vpop.permute.xlu0 %561
    %v564 = vadd.f32 %v554, %v562
    %v565 = vtanh.pop %v564
    %567 = vrot.lane.b32.xlu0 %v565, 32
    %v568 = vpop.permute.xlu0 %567
    %v570 = vmul.f32 %v549, %v568
    %572 = vrot.lane.b32.xlu0 %v570, 64
    %v573 = vpop.permute.xlu0 %572
    %vm575 = vcmask 261126
    %576 = vst.msk [vmem:[#allocation2] sm:$0xc0] %vm575, %v573
    %v577 = vrot.slane %v570, 6
    %578 = vrot.lane.b32.xlu0 %v577, 64
    %v579 = vpop.permute.xlu0 %578
    %v580 = vsel %vm139, %v579, 0
    %582 = vmatprep.subr.mxu0 0.0
    %583 = vmatpush1.msra.mxu0 %v42
    %584 = vmatprep.subr.mxu0 0.0
    %585 = vmatpush1.msra.mxu0 %v43
    %586 = vmatprep.subr.mxu0 0.0
    %587 = vmatpush1.msra.mxu0 %v44
    %588 = vmatprep.subr.mxu0 0.0
    %589 = vmatpush1.msra.mxu0 %v45
    %590 = vmatprep.subr.mxu0 0.0
    %591 = vmatpush1.msra.mxu0 0.0
    %592 = vmatprep.subr.mxu0 0.0
    %593 = vmatpush1.msra.mxu0 0.0
    %594 = vmatprep.subr.mxu0 0.0
    %595 = vmatpush1.msra.mxu0 0.0
    %596 = vmatprep.subr.mxu0 0.0
    %597 = vmatpush1.msra.mxu0 0.0
    %598 = vmatprep.subr.mxu0 0.0
    %599 = vmatpush1.msra.mxu0 0.0
    %600 = vmatprep.subr.mxu0 0.0
    %601 = vmatpush1.msra.mxu0 0.0
    %602 = vmatprep.subr.mxu0 0.0
    %603 = vmatpush1.msra.mxu0 0.0
    %604 = vmatprep.subr.mxu0 0.0
    %605 = vmatpush1.msra.mxu0 0.0
    %606 = vmatprep.subr.mxu0 0.0
    %607 = vmatpush1.msra.mxu0 0.0
    %608 = vmatprep.subr.mxu0 0.0
    %609 = vmatpush1.msra.mxu0 0.0
    %610 = vmatprep.subr.mxu0 0.0
    %611 = vmatpush1.msra.mxu0 0.0
    %612 = vmatprep.subr.mxu0 0.0
    %613 = vmatpush1.msra.mxu0 0.0
    %614 = vmatprep.subr.mxu0 0.0
    %615 = vmatpush1.msra.mxu0 0.0
    %616 = vmatprep.subr.mxu0 0.0
    %617 = vmatpush1.msra.mxu0 0.0
    %618 = vmatprep.subr.mxu0 0.0
    %619 = vmatpush1.msra.mxu0 0.0
    %620 = vmatprep.subr.mxu0 0.0
    %621 = vmatpush1.msra.mxu0 0.0
    %622 = vmatprep.subr.mxu0 0.0
    %623 = vmatpush1.msra.mxu0 0.0
    %624 = vmatprep.subr.mxu0 0.0
    %625 = vmatpush1.msra.mxu0 0.0
    %626 = vmatprep.subr.mxu0 0.0
    %627 = vmatpush1.msra.mxu0 0.0
    %628 = vmatprep.subr.mxu0 0.0
    %629 = vmatpush1.msra.mxu0 0.0
    %630 = vmatprep.subr.mxu0 0.0
    %631 = vmatpush1.msra.mxu0 0.0
    %632 = vmatprep.subr.mxu0 0.0
    %633 = vmatpush1.msra.mxu0 0.0
    %634 = vmatprep.subr.mxu0 0.0
    %635 = vmatpush1.msra.mxu0 0.0
    %636 = vmatprep.subr.mxu0 0.0
    %637 = vmatpush1.msra.mxu0 0.0
    %638 = vmatprep.subr.mxu0 0.0
    %639 = vmatpush1.msra.mxu0 0.0
    %640 = vmatprep.subr.mxu0 0.0
    %641 = vmatpush1.msra.mxu0 0.0
    %642 = vmatprep.subr.mxu0 0.0
    %643 = vmatpush1.msra.mxu0 0.0
    %644 = vmatprep.subr.mxu0 0.0
    %645 = vmatpush1.msra.mxu0 0.0
    %646 = vmatprep.mubr.f32.mxu0 0.0
    %647 = vmatmul.mubr.f32.gmra.mrb[0].mxu0 %v580
    %v648 = vpop.f32.mrb[0].mxu0
    %v649 = vadd.f32 0.0, %v648
    %v650 = vpop.f32.mrb[0].mxu0
    %651 = vdwg.mxu0
    %v652 = vadd.f32 %v136, %v649
    %v653 = vxor.u32 %v652, 2147483648
    %v654 = vmul.f32 %v653, 1.442695
    %v655 = vpow.pop %v654
    %v656 = vadd.f32 %v655, 1.0
    %v657 = vrcp.pop %v656
    %v658 = vmul.f32 1.0, %v657
    %v659 = vtanh.pop %v652
    %v661 = vrot.slane %v564, 6
    %v663 = vmul.f32 %v658, %v661
    %665 = vrot.lane.b32.xlu0 %v659, 32
    %v666 = vpop.permute.xlu0 %665
    %v668 = vmul.f32 %v658, %v666
    %670 = vrot.lane.b32.xlu0 %v668, 32
    %v671 = vpop.permute.xlu0 %670
    %v673 = vadd.f32 %v663, %v671
    %v674 = vtanh.pop %v673
    %676 = vrot.lane.b32.xlu0 %v674, 32
    %v677 = vpop.permute.xlu0 %676
    %v679 = vmul.f32 %v658, %v677
    %681 = vrot.lane.b32.xlu0 %v679, 64
    %v682 = vpop.permute.xlu0 %681
    %684 = vst.msk [vmem:[#allocation2 + $0x8] sm:$0x3] %vm242, %v682
    %v685 = vsel %vm139, %v682, 0
    %687 = vmatprep.subr.mxu0 0.0
    %688 = vmatpush1.msra.mxu0 %v42
    %689 = vmatprep.subr.mxu0 0.0
    %690 = vmatpush1.msra.mxu0 %v43
    %691 = vmatprep.subr.mxu0 0.0
    %692 = vmatpush1.msra.mxu0 %v44
    %693 = vmatprep.subr.mxu0 0.0
    %694 = vmatpush1.msra.mxu0 %v45
    %695 = vmatprep.subr.mxu0 0.0
    %696 = vmatpush1.msra.mxu0 0.0
    %697 = vmatprep.subr.mxu0 0.0
    %698 = vmatpush1.msra.mxu0 0.0
    %699 = vmatprep.subr.mxu0 0.0
    %700 = vmatpush1.msra.mxu0 0.0
    %701 = vmatprep.subr.mxu0 0.0
    %702 = vmatpush1.msra.mxu0 0.0
    %703 = vmatprep.subr.mxu0 0.0
    %704 = vmatpush1.msra.mxu0 0.0
    %705 = vmatprep.subr.mxu0 0.0
    %706 = vmatpush1.msra.mxu0 0.0
    %707 = vmatprep.subr.mxu0 0.0
    %708 = vmatpush1.msra.mxu0 0.0
    %709 = vmatprep.subr.mxu0 0.0
    %710 = vmatpush1.msra.mxu0 0.0
    %711 = vmatprep.subr.mxu0 0.0
    %712 = vmatpush1.msra.mxu0 0.0
    %713 = vmatprep.subr.mxu0 0.0
    %714 = vmatpush1.msra.mxu0 0.0
    %715 = vmatprep.subr.mxu0 0.0
    %716 = vmatpush1.msra.mxu0 0.0
    %717 = vmatprep.subr.mxu0 0.0
    %718 = vmatpush1.msra.mxu0 0.0
    %719 = vmatprep.subr.mxu0 0.0
    %720 = vmatpush1.msra.mxu0 0.0
    %721 = vmatprep.subr.mxu0 0.0
    %722 = vmatpush1.msra.mxu0 0.0
    %723 = vmatprep.subr.mxu0 0.0
    %724 = vmatpush1.msra.mxu0 0.0
    %725 = vmatprep.subr.mxu0 0.0
    %726 = vmatpush1.msra.mxu0 0.0
    %727 = vmatprep.subr.mxu0 0.0
    %728 = vmatpush1.msra.mxu0 0.0
    %729 = vmatprep.subr.mxu0 0.0
    %730 = vmatpush1.msra.mxu0 0.0
    %731 = vmatprep.subr.mxu0 0.0
    %732 = vmatpush1.msra.mxu0 0.0
    %733 = vmatprep.subr.mxu0 0.0
    %734 = vmatpush1.msra.mxu0 0.0
    %735 = vmatprep.subr.mxu0 0.0
    %736 = vmatpush1.msra.mxu0 0.0
    %737 = vmatprep.subr.mxu0 0.0
    %738 = vmatpush1.msra.mxu0 0.0
    %739 = vmatprep.subr.mxu0 0.0
    %740 = vmatpush1.msra.mxu0 0.0
    %741 = vmatprep.subr.mxu0 0.0
    %742 = vmatpush1.msra.mxu0 0.0
    %743 = vmatprep.subr.mxu0 0.0
    %744 = vmatpush1.msra.mxu0 0.0
    %745 = vmatprep.subr.mxu0 0.0
    %746 = vmatpush1.msra.mxu0 0.0
    %747 = vmatprep.subr.mxu0 0.0
    %748 = vmatpush1.msra.mxu0 0.0
    %749 = vmatprep.subr.mxu0 0.0
    %750 = vmatpush1.msra.mxu0 0.0
    %751 = vmatprep.mubr.f32.mxu0 0.0
    %752 = vmatmul.mubr.f32.gmra.mrb[0].mxu0 %v685
    %v753 = vpop.f32.mrb[0].mxu0
    %v754 = vadd.f32 0.0, %v753
    %v755 = vpop.f32.mrb[0].mxu0
    %756 = vdwg.mxu0
    %v758 = vrot.slane %v754, 6
    %v760 = vadd.f32 %v136, %v758
    %v761 = vxor.u32 %v760, 2147483648
    %v762 = vmul.f32 %v761, 1.442695
    %v763 = vpow.pop %v762
    %v764 = vadd.f32 %v763, 1.0
    %v765 = vrcp.pop %v764
    %v766 = vmul.f32 1.0, %v765
    %v767 = vtanh.pop %v760
    %v769 = vrot.slane %v673, 6
    %v771 = vmul.f32 %v766, %v769
    %773 = vrot.lane.b32.xlu0 %v767, 32
    %v774 = vpop.permute.xlu0 %773
    %v776 = vmul.f32 %v766, %v774
    %778 = vrot.lane.b32.xlu0 %v776, 32
    %v779 = vpop.permute.xlu0 %778
    %v781 = vadd.f32 %v771, %v779
    %v782 = vtanh.pop %v781
    %784 = vrot.lane.b32.xlu0 %v782, 32
    %v785 = vpop.permute.xlu0 %784
    %v787 = vmul.f32 %v766, %v785
    %789 = vrot.lane.b32.xlu0 %v787, 64
    %v790 = vpop.permute.xlu0 %789
    %792 = vst.msk [vmem:[#allocation2 + $0x8] sm:$0xc] %vm351, %v790
    %v793 = vrot.slane %v787, 2
    %794 = vrot.lane.b32.xlu0 %v793, 64
    %v795 = vpop.permute.xlu0 %794
    %v796 = vsel %vm139, %v795, 0
    %798 = vmatprep.subr.mxu0 0.0
    %799 = vmatpush1.msra.mxu0 %v42
    %800 = vmatprep.subr.mxu0 0.0
    %801 = vmatpush1.msra.mxu0 %v43
    %802 = vmatprep.subr.mxu0 0.0
    %803 = vmatpush1.msra.mxu0 %v44
    %804 = vmatprep.subr.mxu0 0.0
    %805 = vmatpush1.msra.mxu0 %v45
    %806 = vmatprep.subr.mxu0 0.0
    %807 = vmatpush1.msra.mxu0 0.0
    %808 = vmatprep.subr.mxu0 0.0
    %809 = vmatpush1.msra.mxu0 0.0
    %810 = vmatprep.subr.mxu0 0.0
    %811 = vmatpush1.msra.mxu0 0.0
    %812 = vmatprep.subr.mxu0 0.0
    %813 = vmatpush1.msra.mxu0 0.0
    %814 = vmatprep.subr.mxu0 0.0
    %815 = vmatpush1.msra.mxu0 0.0
    %816 = vmatprep.subr.mxu0 0.0
    %817 = vmatpush1.msra.mxu0 0.0
    %818 = vmatprep.subr.mxu0 0.0
    %819 = vmatpush1.msra.mxu0 0.0
    %820 = vmatprep.subr.mxu0 0.0
    %821 = vmatpush1.msra.mxu0 0.0
    %822 = vmatprep.subr.mxu0 0.0
    %823 = vmatpush1.msra.mxu0 0.0
    %824 = vmatprep.subr.mxu0 0.0
    %825 = vmatpush1.msra.mxu0 0.0
    %826 = vmatprep.subr.mxu0 0.0
    %827 = vmatpush1.msra.mxu0 0.0
    %828 = vmatprep.subr.mxu0 0.0
    %829 = vmatpush1.msra.mxu0 0.0
    %830 = vmatprep.subr.mxu0 0.0
    %831 = vmatpush1.msra.mxu0 0.0
    %832 = vmatprep.subr.mxu0 0.0
    %833 = vmatpush1.msra.mxu0 0.0
    %834 = vmatprep.subr.mxu0 0.0
    %835 = vmatpush1.msra.mxu0 0.0
    %836 = vmatprep.subr.mxu0 0.0
    %837 = vmatpush1.msra.mxu0 0.0
    %838 = vmatprep.subr.mxu0 0.0
    %839 = vmatpush1.msra.mxu0 0.0
    %840 = vmatprep.subr.mxu0 0.0
    %841 = vmatpush1.msra.mxu0 0.0
    %842 = vmatprep.subr.mxu0 0.0
    %843 = vmatpush1.msra.mxu0 0.0
    %844 = vmatprep.subr.mxu0 0.0
    %845 = vmatpush1.msra.mxu0 0.0
    %846 = vmatprep.subr.mxu0 0.0
    %847 = vmatpush1.msra.mxu0 0.0
    %848 = vmatprep.subr.mxu0 0.0
    %849 = vmatpush1.msra.mxu0 0.0
    %850 = vmatprep.subr.mxu0 0.0
    %851 = vmatpush1.msra.mxu0 0.0
    %852 = vmatprep.subr.mxu0 0.0
    %853 = vmatpush1.msra.mxu0 0.0
    %854 = vmatprep.subr.mxu0 0.0
    %855 = vmatpush1.msra.mxu0 0.0
    %856 = vmatprep.subr.mxu0 0.0
    %857 = vmatpush1.msra.mxu0 0.0
    %858 = vmatprep.subr.mxu0 0.0
    %859 = vmatpush1.msra.mxu0 0.0
    %860 = vmatprep.subr.mxu0 0.0
    %861 = vmatpush1.msra.mxu0 0.0
    %862 = vmatprep.mubr.f32.mxu0 0.0
    %863 = vmatmul.mubr.f32.gmra.mrb[0].mxu0 %v796
    %v864 = vpop.f32.mrb[0].mxu0
    %v865 = vadd.f32 0.0, %v864
    %v866 = vpop.f32.mrb[0].mxu0
    %867 = vdwg.mxu0
    %v869 = vrot.slane %v865, 4
    %v871 = vadd.f32 %v136, %v869
    %v872 = vxor.u32 %v871, 2147483648
    %v873 = vmul.f32 %v872, 1.442695
    %v874 = vpow.pop %v873
    %v875 = vadd.f32 %v874, 1.0
    %v876 = vrcp.pop %v875
    %v877 = vmul.f32 1.0, %v876
    %v878 = vtanh.pop %v871
    %v880 = vrot.slane %v781, 6
    %v882 = vmul.f32 %v877, %v880
    %884 = vrot.lane.b32.xlu0 %v878, 32
    %v885 = vpop.permute.xlu0 %884
    %v887 = vmul.f32 %v877, %v885
    %889 = vrot.lane.b32.xlu0 %v887, 32
    %v890 = vpop.permute.xlu0 %889
    %v892 = vadd.f32 %v882, %v890
    %v893 = vtanh.pop %v892
    %895 = vrot.lane.b32.xlu0 %v893, 32
    %v896 = vpop.permute.xlu0 %895
    %v898 = vmul.f32 %v877, %v896
    %900 = vrot.lane.b32.xlu0 %v898, 64
    %v901 = vpop.permute.xlu0 %900
    %903 = vst.msk [vmem:[#allocation2 + $0x8] sm:$0x30] %vm463, %v901
    %v904 = vrot.slane %v898, 4
    %905 = vrot.lane.b32.xlu0 %v904, 64
    %v906 = vpop.permute.xlu0 %905
    %v907 = vsel %vm139, %v906, 0
    %909 = vmatprep.subr.mxu0 0.0
    %910 = vmatpush1.msra.mxu0 %v42
    %911 = vmatprep.subr.mxu0 0.0
    %912 = vmatpush1.msra.mxu0 %v43
    %913 = vmatprep.subr.mxu0 0.0
    %914 = vmatpush1.msra.mxu0 %v44
    %915 = vmatprep.subr.mxu0 0.0
    %916 = vmatpush1.msra.mxu0 %v45
    %917 = vmatprep.subr.mxu0 0.0
    %918 = vmatpush1.msra.mxu0 0.0
    %919 = vmatprep.subr.mxu0 0.0
    %920 = vmatpush1.msra.mxu0 0.0
    %921 = vmatprep.subr.mxu0 0.0
    %922 = vmatpush1.msra.mxu0 0.0
    %923 = vmatprep.subr.mxu0 0.0
    %924 = vmatpush1.msra.mxu0 0.0
    %925 = vmatprep.subr.mxu0 0.0
    %926 = vmatpush1.msra.mxu0 0.0
    %927 = vmatprep.subr.mxu0 0.0
    %928 = vmatpush1.msra.mxu0 0.0
    %929 = vmatprep.subr.mxu0 0.0
    %930 = vmatpush1.msra.mxu0 0.0
    %931 = vmatprep.subr.mxu0 0.0
    %932 = vmatpush1.msra.mxu0 0.0
    %933 = vmatprep.subr.mxu0 0.0
    %934 = vmatpush1.msra.mxu0 0.0
    %935 = vmatprep.subr.mxu0 0.0
    %936 = vmatpush1.msra.mxu0 0.0
    %937 = vmatprep.subr.mxu0 0.0
    %938 = vmatpush1.msra.mxu0 0.0
    %939 = vmatprep.subr.mxu0 0.0
    %940 = vmatpush1.msra.mxu0 0.0
    %941 = vmatprep.subr.mxu0 0.0
    %942 = vmatpush1.msra.mxu0 0.0
    %943 = vmatprep.subr.mxu0 0.0
    %944 = vmatpush1.msra.mxu0 0.0
    %945 = vmatprep.subr.mxu0 0.0
    %946 = vmatpush1.msra.mxu0 0.0
    %947 = vmatprep.subr.mxu0 0.0
    %948 = vmatpush1.msra.mxu0 0.0
    %949 = vmatprep.subr.mxu0 0.0
    %950 = vmatpush1.msra.mxu0 0.0
    %951 = vmatprep.subr.mxu0 0.0
    %952 = vmatpush1.msra.mxu0 0.0
    %953 = vmatprep.subr.mxu0 0.0
    %954 = vmatpush1.msra.mxu0 0.0
    %955 = vmatprep.subr.mxu0 0.0
    %956 = vmatpush1.msra.mxu0 0.0
    %957 = vmatprep.subr.mxu0 0.0
    %958 = vmatpush1.msra.mxu0 0.0
    %959 = vmatprep.subr.mxu0 0.0
    %960 = vmatpush1.msra.mxu0 0.0
    %961 = vmatprep.subr.mxu0 0.0
    %962 = vmatpush1.msra.mxu0 0.0
    %963 = vmatprep.subr.mxu0 0.0
    %964 = vmatpush1.msra.mxu0 0.0
    %965 = vmatprep.subr.mxu0 0.0
    %966 = vmatpush1.msra.mxu0 0.0
    %967 = vmatprep.subr.mxu0 0.0
    %968 = vmatpush1.msra.mxu0 0.0
    %969 = vmatprep.subr.mxu0 0.0
    %970 = vmatpush1.msra.mxu0 0.0
    %971 = vmatprep.subr.mxu0 0.0
    %972 = vmatpush1.msra.mxu0 0.0
    %973 = vmatprep.mubr.f32.mxu0 0.0
    %974 = vmatmul.mubr.f32.gmra.mrb[0].mxu0 %v907
    %v975 = vpop.f32.mrb[0].mxu0
    %v976 = vadd.f32 0.0, %v975
    %v977 = vpop.f32.mrb[0].mxu0
    %978 = vdwg.mxu0
    %v980 = vrot.slane %v976, 2
    %v982 = vadd.f32 %v136, %v980
    %v983 = vxor.u32 %v982, 2147483648
    %v984 = vmul.f32 %v983, 1.442695
    %v985 = vpow.pop %v984
    %v986 = vadd.f32 %v985, 1.0
    %v987 = vrcp.pop %v986
    %v988 = vmul.f32 1.0, %v987
    %v989 = vtanh.pop %v982
    %v991 = vrot.slane %v892, 6
    %v993 = vmul.f32 %v988, %v991
    %995 = vrot.lane.b32.xlu0 %v989, 32
    %v996 = vpop.permute.xlu0 %995
    %v998 = vmul.f32 %v988, %v996
    %1000 = vrot.lane.b32.xlu0 %v998, 32
    %v1001 = vpop.permute.xlu0 %1000
    %v1003 = vadd.f32 %v993, %v1001
    %v1004 = vtanh.pop %v1003
    %1006 = vrot.lane.b32.xlu0 %v1004, 32
    %v1007 = vpop.permute.xlu0 %1006
    %v1009 = vmul.f32 %v988, %v1007
    %1011 = vrot.lane.b32.xlu0 %v1009, 64
    %v1012 = vpop.permute.xlu0 %1011
    %1014 = vst.msk [vmem:[#allocation2 + $0x8] sm:$0xc0] %vm575, %v1012
    %v1015 = vld [vmem:[#allocation2] sm:$0xff]
    %v1016 = vld [vmem:[#allocation2 + $0x8] sm:$0xff]
    %v1017 = vld [vmem:[%s4] sm:$0xff]
    %v1018 = vld [vmem:[%s4 + $0x8] sm:$0xff]
    %v1019 = vld [vmem:[%s4 + $0x10] sm:$0xff]
    %v1020 = vld [vmem:[%s4 + $0x18] sm:$0xff]
    %v1021 = vld [vmem:[%s5] sm:$0xff]
    %v1022 = vld [vmem:[%s5 + $0x8] sm:$0xff]
    %v1023 = vld [vmem:[%s5 + $0x10] sm:$0xff]
    %v1024 = vld [vmem:[%s5 + $0x18] sm:$0xff]
    %v1025 = vld [vmem:[%s6] sm:$0x1]
    %v1027 = vlaneseq
    %v1028 = vshrl.u32 %v1027, 7
    %v1029 = vsub.s32 0, %v1028
    %v1030 = vrot.slane %v1025, %v1029
    %v1033 = vsel %vm139, %v1015, 0
    %v1036 = vsel %vm139, %v1016, 0
    %1038 = vmatprep.subr.mxu0 0.0
    %1039 = vmatpush1.msra.mxu0 %v1017
    %1040 = vmatprep.subr.mxu0 0.0
    %1041 = vmatpush1.msra.mxu0 %v1018
    %1042 = vmatprep.subr.mxu0 0.0
    %1043 = vmatpush1.msra.mxu0 %v1019
    %1044 = vmatprep.subr.mxu0 0.0
    %1045 = vmatpush1.msra.mxu0 %v1020
    %1046 = vmatprep.subr.mxu0 0.0
    %1047 = vmatpush1.msra.mxu0 0.0
    %1048 = vmatprep.subr.mxu0 0.0
    %1049 = vmatpush1.msra.mxu0 0.0
    %1050 = vmatprep.subr.mxu0 0.0
    %1051 = vmatpush1.msra.mxu0 0.0
    %1052 = vmatprep.subr.mxu0 0.0
    %1053 = vmatpush1.msra.mxu0 0.0
    %1054 = vmatprep.subr.mxu0 0.0
    %1055 = vmatpush1.msra.mxu0 0.0
    %1056 = vmatprep.subr.mxu0 0.0
    %1057 = vmatpush1.msra.mxu0 0.0
    %1058 = vmatprep.subr.mxu0 0.0
    %1059 = vmatpush1.msra.mxu0 0.0
    %1060 = vmatprep.subr.mxu0 0.0
    %1061 = vmatpush1.msra.mxu0 0.0
    %1062 = vmatprep.subr.mxu0 0.0
    %1063 = vmatpush1.msra.mxu0 0.0
    %1064 = vmatprep.subr.mxu0 0.0
    %1065 = vmatpush1.msra.mxu0 0.0
    %1066 = vmatprep.subr.mxu0 0.0
    %1067 = vmatpush1.msra.mxu0 0.0
    %1068 = vmatprep.subr.mxu0 0.0
    %1069 = vmatpush1.msra.mxu0 0.0
    %1070 = vmatprep.subr.mxu0 0.0
    %1071 = vmatpush1.msra.mxu0 0.0
    %1072 = vmatprep.subr.mxu0 0.0
    %1073 = vmatpush1.msra.mxu0 0.0
    %1074 = vmatprep.subr.mxu0 0.0
    %1075 = vmatpush1.msra.mxu0 0.0
    %1076 = vmatprep.subr.mxu0 0.0
    %1077 = vmatpush1.msra.mxu0 0.0
    %1078 = vmatprep.subr.mxu0 0.0
    %1079 = vmatpush1.msra.mxu0 0.0
    %1080 = vmatprep.subr.mxu0 0.0
    %1081 = vmatpush1.msra.mxu0 0.0
    %1082 = vmatprep.subr.mxu0 0.0
    %1083 = vmatpush1.msra.mxu0 0.0
    %1084 = vmatprep.subr.mxu0 0.0
    %1085 = vmatpush1.msra.mxu0 0.0
    %1086 = vmatprep.subr.mxu0 0.0
    %1087 = vmatpush1.msra.mxu0 0.0
    %1088 = vmatprep.subr.mxu0 0.0
    %1089 = vmatpush1.msra.mxu0 0.0
    %1090 = vmatprep.subr.mxu0 0.0
    %1091 = vmatpush1.msra.mxu0 0.0
    %1092 = vmatprep.subr.mxu0 0.0
    %1093 = vmatpush1.msra.mxu0 0.0
    %1094 = vmatprep.subr.mxu0 0.0
    %1095 = vmatpush1.msra.mxu0 0.0
    %1096 = vmatprep.subr.mxu0 0.0
    %1097 = vmatpush1.msra.mxu0 0.0
    %1098 = vmatprep.subr.mxu0 0.0
    %1099 = vmatpush1.msra.mxu0 0.0
    %1100 = vmatprep.subr.mxu0 0.0
    %1101 = vmatpush1.msra.mxu0 0.0
    %1102 = vmatprep.mubr.f32.mxu0 0.0
    %1103 = vmatmul.mubr.f32.gmra.mrb[0].mxu0 %v1033
    %v1104 = vpop.f32.mrb[0].mxu0
    %v1105 = vadd.f32 %v1030, %v1104
    %v1106 = vpop.f32.mrb[0].mxu0
    %1107 = vmatprep.mubr.f32.mxu0 0.0
    %1108 = vmatmul.mubr.f32.gmra.mrb[0].mxu0 %v1036
    %v1109 = vpop.f32.mrb[0].mxu0
    %v1110 = vadd.f32 %v1030, %v1109
    %v1111 = vpop.f32.mrb[0].mxu0
    %1112 = vdwg.mxu0
    %1113 = vmatprep.subr.mxu0 0.0
    %1114 = vmatpush1.msra.mxu0 %v1021
    %1115 = vmatprep.subr.mxu0 0.0
    %1116 = vmatpush1.msra.mxu0 %v1022
    %1117 = vmatprep.subr.mxu0 0.0
    %1118 = vmatpush1.msra.mxu0 %v1023
    %1119 = vmatprep.subr.mxu0 0.0
    %1120 = vmatpush1.msra.mxu0 %v1024
    %1121 = vmatprep.subr.mxu0 0.0
    %1122 = vmatpush1.msra.mxu0 0.0
    %1123 = vmatprep.subr.mxu0 0.0
    %1124 = vmatpush1.msra.mxu0 0.0
    %1125 = vmatprep.subr.mxu0 0.0
    %1126 = vmatpush1.msra.mxu0 0.0
    %1127 = vmatprep.subr.mxu0 0.0
    %1128 = vmatpush1.msra.mxu0 0.0
    %1129 = vmatprep.subr.mxu0 0.0
    %1130 = vmatpush1.msra.mxu0 0.0
    %1131 = vmatprep.subr.mxu0 0.0
    %1132 = vmatpush1.msra.mxu0 0.0
    %1133 = vmatprep.subr.mxu0 0.0
    %1134 = vmatpush1.msra.mxu0 0.0
    %1135 = vmatprep.subr.mxu0 0.0
    %1136 = vmatpush1.msra.mxu0 0.0
    %1137 = vmatprep.subr.mxu0 0.0
    %1138 = vmatpush1.msra.mxu0 0.0
    %1139 = vmatprep.subr.mxu0 0.0
    %1140 = vmatpush1.msra.mxu0 0.0
    %1141 = vmatprep.subr.mxu0 0.0
    %1142 = vmatpush1.msra.mxu0 0.0
    %1143 = vmatprep.subr.mxu0 0.0
    %1144 = vmatpush1.msra.mxu0 0.0
    %1145 = vmatprep.subr.mxu0 0.0
    %1146 = vmatpush1.msra.mxu0 0.0
    %1147 = vmatprep.subr.mxu0 0.0
    %1148 = vmatpush1.msra.mxu0 0.0
    %1149 = vmatprep.subr.mxu0 0.0
    %1150 = vmatpush1.msra.mxu0 0.0
    %1151 = vmatprep.subr.mxu0 0.0
    %1152 = vmatpush1.msra.mxu0 0.0
    %1153 = vmatprep.subr.mxu0 0.0
    %1154 = vmatpush1.msra.mxu0 0.0
    %1155 = vmatprep.subr.mxu0 0.0
    %1156 = vmatpush1.msra.mxu0 0.0
    %1157 = vmatprep.subr.mxu0 0.0
    %1158 = vmatpush1.msra.mxu0 0.0
    %1159 = vmatprep.subr.mxu0 0.0
    %1160 = vmatpush1.msra.mxu0 0.0
    %1161 = vmatprep.subr.mxu0 0.0
    %1162 = vmatpush1.msra.mxu0 0.0
    %1163 = vmatprep.subr.mxu0 0.0
    %1164 = vmatpush1.msra.mxu0 0.0
    %1165 = vmatprep.subr.mxu0 0.0
    %1166 = vmatpush1.msra.mxu0 0.0
    %1167 = vmatprep.subr.mxu0 0.0
    %1168 = vmatpush1.msra.mxu0 0.0
    %1169 = vmatprep.subr.mxu0 0.0
    %1170 = vmatpush1.msra.mxu0 0.0
    %1171 = vmatprep.subr.mxu0 0.0
    %1172 = vmatpush1.msra.mxu0 0.0
    %1173 = vmatprep.subr.mxu0 0.0
    %1174 = vmatpush1.msra.mxu0 0.0
    %1175 = vmatprep.subr.mxu0 0.0
    %1176 = vmatpush1.msra.mxu0 0.0
    %1177 = vmatprep.mubr.f32.mxu0 0.0
    %1178 = vmatmul.mubr.f32.gmra.mrb[0].mxu0 %v141
    %v1179 = vpop.f32.mrb[0].mxu0
    %v1180 = vadd.f32 0.0, %v1179
    %v1181 = vpop.f32.mrb[0].mxu0
    %1182 = vdwg.mxu0
    %v1183 = vadd.f32 %v1105, %v1180
    %v1184 = vxor.u32 %v1183, 2147483648
    %v1185 = vmul.f32 %v1184, 1.442695
    %v1186 = vpow.pop %v1185
    %v1187 = vadd.f32 %v1186, 1.0
    %v1188 = vrcp.pop %v1187
    %v1189 = vmul.f32 1.0, %v1188
    %v1190 = vtanh.pop %v1183
    %v1191 = vmul.f32 %v1189, 0.0
    %1193 = vrot.lane.b32.xlu0 %v1190, 32
    %v1194 = vpop.permute.xlu0 %1193
    %v1196 = vmul.f32 %v1189, %v1194
    %1198 = vrot.lane.b32.xlu0 %v1196, 32
    %v1199 = vpop.permute.xlu0 %1198
    %v1201 = vadd.f32 %v1191, %v1199
    %v1202 = vtanh.pop %v1201
    %1204 = vrot.lane.b32.xlu0 %v1202, 32
    %v1205 = vpop.permute.xlu0 %1204
    %v1207 = vmul.f32 %v1189, %v1205
    %1209 = vrot.lane.b32.xlu0 %v1207, 64
    %v1210 = vpop.permute.xlu0 %1209
    %v1211 = vsel %vm139, %v1210, 0
    %1213 = vmatprep.subr.mxu0 0.0
    %1214 = vmatpush1.msra.mxu0 %v1021
    %1215 = vmatprep.subr.mxu0 0.0
    %1216 = vmatpush1.msra.mxu0 %v1022
    %1217 = vmatprep.subr.mxu0 0.0
    %1218 = vmatpush1.msra.mxu0 %v1023
    %1219 = vmatprep.subr.mxu0 0.0
    %1220 = vmatpush1.msra.mxu0 %v1024
    %1221 = vmatprep.subr.mxu0 0.0
    %1222 = vmatpush1.msra.mxu0 0.0
    %1223 = vmatprep.subr.mxu0 0.0
    %1224 = vmatpush1.msra.mxu0 0.0
    %1225 = vmatprep.subr.mxu0 0.0
    %1226 = vmatpush1.msra.mxu0 0.0
    %1227 = vmatprep.subr.mxu0 0.0
    %1228 = vmatpush1.msra.mxu0 0.0
    %1229 = vmatprep.subr.mxu0 0.0
    %1230 = vmatpush1.msra.mxu0 0.0
    %1231 = vmatprep.subr.mxu0 0.0
    %1232 = vmatpush1.msra.mxu0 0.0
    %1233 = vmatprep.subr.mxu0 0.0
    %1234 = vmatpush1.msra.mxu0 0.0
    %1235 = vmatprep.subr.mxu0 0.0
    %1236 = vmatpush1.msra.mxu0 0.0
    %1237 = vmatprep.subr.mxu0 0.0
    %1238 = vmatpush1.msra.mxu0 0.0
    %1239 = vmatprep.subr.mxu0 0.0
    %1240 = vmatpush1.msra.mxu0 0.0
    %1241 = vmatprep.subr.mxu0 0.0
    %1242 = vmatpush1.msra.mxu0 0.0
    %1243 = vmatprep.subr.mxu0 0.0
    %1244 = vmatpush1.msra.mxu0 0.0
    %1245 = vmatprep.subr.mxu0 0.0
    %1246 = vmatpush1.msra.mxu0 0.0
    %1247 = vmatprep.subr.mxu0 0.0
    %1248 = vmatpush1.msra.mxu0 0.0
    %1249 = vmatprep.subr.mxu0 0.0
    %1250 = vmatpush1.msra.mxu0 0.0
    %1251 = vmatprep.subr.mxu0 0.0
    %1252 = vmatpush1.msra.mxu0 0.0
    %1253 = vmatprep.subr.mxu0 0.0
    %1254 = vmatpush1.msra.mxu0 0.0
    %1255 = vmatprep.subr.mxu0 0.0
    %1256 = vmatpush1.msra.mxu0 0.0
    %1257 = vmatprep.subr.mxu0 0.0
    %1258 = vmatpush1.msra.mxu0 0.0
    %1259 = vmatprep.subr.mxu0 0.0
    %1260 = vmatpush1.msra.mxu0 0.0
    %1261 = vmatprep.subr.mxu0 0.0
    %1262 = vmatpush1.msra.mxu0 0.0
    %1263 = vmatprep.subr.mxu0 0.0
    %1264 = vmatpush1.msra.mxu0 0.0
    %1265 = vmatprep.subr.mxu0 0.0
    %1266 = vmatpush1.msra.mxu0 0.0
    %1267 = vmatprep.subr.mxu0 0.0
    %1268 = vmatpush1.msra.mxu0 0.0
    %1269 = vmatprep.subr.mxu0 0.0
    %1270 = vmatpush1.msra.mxu0 0.0
    %1271 = vmatprep.subr.mxu0 0.0
    %1272 = vmatpush1.msra.mxu0 0.0
    %1273 = vmatprep.subr.mxu0 0.0
    %1274 = vmatpush1.msra.mxu0 0.0
    %1275 = vmatprep.subr.mxu0 0.0
    %1276 = vmatpush1.msra.mxu0 0.0
    %1277 = vmatprep.mubr.f32.mxu0 0.0
    %1278 = vmatmul.mubr.f32.gmra.mrb[0].mxu0 %v1211
    %v1279 = vpop.f32.mrb[0].mxu0
    %v1280 = vadd.f32 0.0, %v1279
    %v1281 = vpop.f32.mrb[0].mxu0
    %1282 = vdwg.mxu0
    %v1284 = vrot.slane %v1280, 6
    %v1286 = vadd.f32 %v1105, %v1284
    %v1287 = vxor.u32 %v1286, 2147483648
    %v1288 = vmul.f32 %v1287, 1.442695
    %v1289 = vpow.pop %v1288
    %v1290 = vadd.f32 %v1289, 1.0
    %v1291 = vrcp.pop %v1290
    %v1292 = vmul.f32 1.0, %v1291
    %v1293 = vtanh.pop %v1286
    %v1295 = vrot.slane %v1201, 6
    %v1297 = vmul.f32 %v1292, %v1295
    %1299 = vrot.lane.b32.xlu0 %v1293, 32
    %v1300 = vpop.permute.xlu0 %1299
    %v1302 = vmul.f32 %v1292, %v1300
    %1304 = vrot.lane.b32.xlu0 %v1302, 32
    %v1305 = vpop.permute.xlu0 %1304
    %v1307 = vadd.f32 %v1297, %v1305
    %v1308 = vtanh.pop %v1307
    %1310 = vrot.lane.b32.xlu0 %v1308, 32
    %v1311 = vpop.permute.xlu0 %1310
    %v1313 = vmul.f32 %v1292, %v1311
    %v1315 = vrot.slane %v1313, 2
    %1316 = vrot.lane.b32.xlu0 %v1315, 64
    %v1317 = vpop.permute.xlu0 %1316
    %v1318 = vsel %vm139, %v1317, 0
    %1320 = vmatprep.subr.mxu0 0.0
    %1321 = vmatpush1.msra.mxu0 %v1021
    %1322 = vmatprep.subr.mxu0 0.0
    %1323 = vmatpush1.msra.mxu0 %v1022
    %1324 = vmatprep.subr.mxu0 0.0
    %1325 = vmatpush1.msra.mxu0 %v1023
    %1326 = vmatprep.subr.mxu0 0.0
    %1327 = vmatpush1.msra.mxu0 %v1024
    %1328 = vmatprep.subr.mxu0 0.0
    %1329 = vmatpush1.msra.mxu0 0.0
    %1330 = vmatprep.subr.mxu0 0.0
    %1331 = vmatpush1.msra.mxu0 0.0
    %1332 = vmatprep.subr.mxu0 0.0
    %1333 = vmatpush1.msra.mxu0 0.0
    %1334 = vmatprep.subr.mxu0 0.0
    %1335 = vmatpush1.msra.mxu0 0.0
    %1336 = vmatprep.subr.mxu0 0.0
    %1337 = vmatpush1.msra.mxu0 0.0
    %1338 = vmatprep.subr.mxu0 0.0
    %1339 = vmatpush1.msra.mxu0 0.0
    %1340 = vmatprep.subr.mxu0 0.0
    %1341 = vmatpush1.msra.mxu0 0.0
    %1342 = vmatprep.subr.mxu0 0.0
    %1343 = vmatpush1.msra.mxu0 0.0
    %1344 = vmatprep.subr.mxu0 0.0
    %1345 = vmatpush1.msra.mxu0 0.0
    %1346 = vmatprep.subr.mxu0 0.0
    %1347 = vmatpush1.msra.mxu0 0.0
    %1348 = vmatprep.subr.mxu0 0.0
    %1349 = vmatpush1.msra.mxu0 0.0
    %1350 = vmatprep.subr.mxu0 0.0
    %1351 = vmatpush1.msra.mxu0 0.0
    %1352 = vmatprep.subr.mxu0 0.0
    %1353 = vmatpush1.msra.mxu0 0.0
    %1354 = vmatprep.subr.mxu0 0.0
    %1355 = vmatpush1.msra.mxu0 0.0
    %1356 = vmatprep.subr.mxu0 0.0
    %1357 = vmatpush1.msra.mxu0 0.0
    %1358 = vmatprep.subr.mxu0 0.0
    %1359 = vmatpush1.msra.mxu0 0.0
    %1360 = vmatprep.subr.mxu0 0.0
    %1361 = vmatpush1.msra.mxu0 0.0
    %1362 = vmatprep.subr.mxu0 0.0
    %1363 = vmatpush1.msra.mxu0 0.0
    %1364 = vmatprep.subr.mxu0 0.0
    %1365 = vmatpush1.msra.mxu0 0.0
    %1366 = vmatprep.subr.mxu0 0.0
    %1367 = vmatpush1.msra.mxu0 0.0
    %1368 = vmatprep.subr.mxu0 0.0
    %1369 = vmatpush1.msra.mxu0 0.0
    %1370 = vmatprep.subr.mxu0 0.0
    %1371 = vmatpush1.msra.mxu0 0.0
    %1372 = vmatprep.subr.mxu0 0.0
    %1373 = vmatpush1.msra.mxu0 0.0
    %1374 = vmatprep.subr.mxu0 0.0
    %1375 = vmatpush1.msra.mxu0 0.0
    %1376 = vmatprep.subr.mxu0 0.0
    %1377 = vmatpush1.msra.mxu0 0.0
    %1378 = vmatprep.subr.mxu0 0.0
    %1379 = vmatpush1.msra.mxu0 0.0
    %1380 = vmatprep.subr.mxu0 0.0
    %1381 = vmatpush1.msra.mxu0 0.0
    %1382 = vmatprep.subr.mxu0 0.0
    %1383 = vmatpush1.msra.mxu0 0.0
    %1384 = vmatprep.mubr.f32.mxu0 0.0
    %1385 = vmatmul.mubr.f32.gmra.mrb[0].mxu0 %v1318
    %v1386 = vpop.f32.mrb[0].mxu0
    %v1387 = vadd.f32 0.0, %v1386
    %v1388 = vpop.f32.mrb[0].mxu0
    %1389 = vdwg.mxu0
    %v1391 = vrot.slane %v1387, 4
    %v1393 = vadd.f32 %v1105, %v1391
    %v1394 = vxor.u32 %v1393, 2147483648
    %v1395 = vmul.f32 %v1394, 1.442695
    %v1396 = vpow.pop %v1395
    %v1397 = vadd.f32 %v1396, 1.0
    %v1398 = vrcp.pop %v1397
    %v1399 = vmul.f32 1.0, %v1398
    %v1400 = vtanh.pop %v1393
    %v1402 = vrot.slane %v1307, 6
    %v1404 = vmul.f32 %v1399, %v1402
    %1406 = vrot.lane.b32.xlu0 %v1400, 32
    %v1407 = vpop.permute.xlu0 %1406
    %v1409 = vmul.f32 %v1399, %v1407
    %1411 = vrot.lane.b32.xlu0 %v1409, 32
    %v1412 = vpop.permute.xlu0 %1411
    %v1414 = vadd.f32 %v1404, %v1412
    %v1415 = vtanh.pop %v1414
    %1417 = vrot.lane.b32.xlu0 %v1415, 32
    %v1418 = vpop.permute.xlu0 %1417
    %v1420 = vmul.f32 %v1399, %v1418
    %v1422 = vrot.slane %v1420, 4
    %1423 = vrot.lane.b32.xlu0 %v1422, 64
    %v1424 = vpop.permute.xlu0 %1423
    %v1425 = vsel %vm139, %v1424, 0
    %1427 = vmatprep.subr.mxu0 0.0
    %1428 = vmatpush1.msra.mxu0 %v1021
    %1429 = vmatprep.subr.mxu0 0.0
    %1430 = vmatpush1.msra.mxu0 %v1022
    %1431 = vmatprep.subr.mxu0 0.0
    %1432 = vmatpush1.msra.mxu0 %v1023
    %1433 = vmatprep.subr.mxu0 0.0
    %1434 = vmatpush1.msra.mxu0 %v1024
    %1435 = vmatprep.subr.mxu0 0.0
    %1436 = vmatpush1.msra.mxu0 0.0
    %1437 = vmatprep.subr.mxu0 0.0
    %1438 = vmatpush1.msra.mxu0 0.0
    %1439 = vmatprep.subr.mxu0 0.0
    %1440 = vmatpush1.msra.mxu0 0.0
    %1441 = vmatprep.subr.mxu0 0.0
    %1442 = vmatpush1.msra.mxu0 0.0
    %1443 = vmatprep.subr.mxu0 0.0
    %1444 = vmatpush1.msra.mxu0 0.0
    %1445 = vmatprep.subr.mxu0 0.0
    %1446 = vmatpush1.msra.mxu0 0.0
    %1447 = vmatprep.subr.mxu0 0.0
    %1448 = vmatpush1.msra.mxu0 0.0
    %1449 = vmatprep.subr.mxu0 0.0
    %1450 = vmatpush1.msra.mxu0 0.0
    %1451 = vmatprep.subr.mxu0 0.0
    %1452 = vmatpush1.msra.mxu0 0.0
    %1453 = vmatprep.subr.mxu0 0.0
    %1454 = vmatpush1.msra.mxu0 0.0
    %1455 = vmatprep.subr.mxu0 0.0
    %1456 = vmatpush1.msra.mxu0 0.0
    %1457 = vmatprep.subr.mxu0 0.0
    %1458 = vmatpush1.msra.mxu0 0.0
    %1459 = vmatprep.subr.mxu0 0.0
    %1460 = vmatpush1.msra.mxu0 0.0
    %1461 = vmatprep.subr.mxu0 0.0
    %1462 = vmatpush1.msra.mxu0 0.0
    %1463 = vmatprep.subr.mxu0 0.0
    %1464 = vmatpush1.msra.mxu0 0.0
    %1465 = vmatprep.subr.mxu0 0.0
    %1466 = vmatpush1.msra.mxu0 0.0
    %1467 = vmatprep.subr.mxu0 0.0
    %1468 = vmatpush1.msra.mxu0 0.0
    %1469 = vmatprep.subr.mxu0 0.0
    %1470 = vmatpush1.msra.mxu0 0.0
    %1471 = vmatprep.subr.mxu0 0.0
    %1472 = vmatpush1.msra.mxu0 0.0
    %1473 = vmatprep.subr.mxu0 0.0
    %1474 = vmatpush1.msra.mxu0 0.0
    %1475 = vmatprep.subr.mxu0 0.0
    %1476 = vmatpush1.msra.mxu0 0.0
    %1477 = vmatprep.subr.mxu0 0.0
    %1478 = vmatpush1.msra.mxu0 0.0
    %1479 = vmatprep.subr.mxu0 0.0
    %1480 = vmatpush1.msra.mxu0 0.0
    %1481 = vmatprep.subr.mxu0 0.0
    %1482 = vmatpush1.msra.mxu0 0.0
    %1483 = vmatprep.subr.mxu0 0.0
    %1484 = vmatpush1.msra.mxu0 0.0
    %1485 = vmatprep.subr.mxu0 0.0
    %1486 = vmatpush1.msra.mxu0 0.0
    %1487 = vmatprep.subr.mxu0 0.0
    %1488 = vmatpush1.msra.mxu0 0.0
    %1489 = vmatprep.subr.mxu0 0.0
    %1490 = vmatpush1.msra.mxu0 0.0
    %1491 = vmatprep.mubr.f32.mxu0 0.0
    %1492 = vmatmul.mubr.f32.gmra.mrb[0].mxu0 %v1425
    %v1493 = vpop.f32.mrb[0].mxu0
    %v1494 = vadd.f32 0.0, %v1493
    %v1495 = vpop.f32.mrb[0].mxu0
    %1496 = vdwg.mxu0
    %v1498 = vrot.slane %v1494, 2
    %v1500 = vadd.f32 %v1105, %v1498
    %v1501 = vxor.u32 %v1500, 2147483648
    %v1502 = vmul.f32 %v1501, 1.442695
    %v1503 = vpow.pop %v1502
    %v1504 = vadd.f32 %v1503, 1.0
    %v1505 = vrcp.pop %v1504
    %v1506 = vmul.f32 1.0, %v1505
    %v1507 = vtanh.pop %v1500
    %v1509 = vrot.slane %v1414, 6
    %v1511 = vmul.f32 %v1506, %v1509
    %1513 = vrot.lane.b32.xlu0 %v1507, 32
    %v1514 = vpop.permute.xlu0 %1513
    %v1516 = vmul.f32 %v1506, %v1514
    %1518 = vrot.lane.b32.xlu0 %v1516, 32
    %v1519 = vpop.permute.xlu0 %1518
    %v1521 = vadd.f32 %v1511, %v1519
    %v1522 = vtanh.pop %v1521
    %1524 = vrot.lane.b32.xlu0 %v1522, 32
    %v1525 = vpop.permute.xlu0 %1524
    %v1527 = vmul.f32 %v1506, %v1525
    %v1529 = vrot.slane %v1527, 6
    %1530 = vrot.lane.b32.xlu0 %v1529, 64
    %v1531 = vpop.permute.xlu0 %1530
    %v1532 = vsel %vm139, %v1531, 0
    %1534 = vmatprep.subr.mxu0 0.0
    %1535 = vmatpush1.msra.mxu0 %v1021
    %1536 = vmatprep.subr.mxu0 0.0
    %1537 = vmatpush1.msra.mxu0 %v1022
    %1538 = vmatprep.subr.mxu0 0.0
    %1539 = vmatpush1.msra.mxu0 %v1023
    %1540 = vmatprep.subr.mxu0 0.0
    %1541 = vmatpush1.msra.mxu0 %v1024
    %1542 = vmatprep.subr.mxu0 0.0
    %1543 = vmatpush1.msra.mxu0 0.0
    %1544 = vmatprep.subr.mxu0 0.0
    %1545 = vmatpush1.msra.mxu0 0.0
    %1546 = vmatprep.subr.mxu0 0.0
    %1547 = vmatpush1.msra.mxu0 0.0
    %1548 = vmatprep.subr.mxu0 0.0
    %1549 = vmatpush1.msra.mxu0 0.0
    %1550 = vmatprep.subr.mxu0 0.0
    %1551 = vmatpush1.msra.mxu0 0.0
    %1552 = vmatprep.subr.mxu0 0.0
    %1553 = vmatpush1.msra.mxu0 0.0
    %1554 = vmatprep.subr.mxu0 0.0
    %1555 = vmatpush1.msra.mxu0 0.0
    %1556 = vmatprep.subr.mxu0 0.0
    %1557 = vmatpush1.msra.mxu0 0.0
    %1558 = vmatprep.subr.mxu0 0.0
    %1559 = vmatpush1.msra.mxu0 0.0
    %1560 = vmatprep.subr.mxu0 0.0
    %1561 = vmatpush1.msra.mxu0 0.0
    %1562 = vmatprep.subr.mxu0 0.0
    %1563 = vmatpush1.msra.mxu0 0.0
    %1564 = vmatprep.subr.mxu0 0.0
    %1565 = vmatpush1.msra.mxu0 0.0
    %1566 = vmatprep.subr.mxu0 0.0
    %1567 = vmatpush1.msra.mxu0 0.0
    %1568 = vmatprep.subr.mxu0 0.0
    %1569 = vmatpush1.msra.mxu0 0.0
    %1570 = vmatprep.subr.mxu0 0.0
    %1571 = vmatpush1.msra.mxu0 0.0
    %1572 = vmatprep.subr.mxu0 0.0
    %1573 = vmatpush1.msra.mxu0 0.0
    %1574 = vmatprep.subr.mxu0 0.0
    %1575 = vmatpush1.msra.mxu0 0.0
    %1576 = vmatprep.subr.mxu0 0.0
    %1577 = vmatpush1.msra.mxu0 0.0
    %1578 = vmatprep.subr.mxu0 0.0
    %1579 = vmatpush1.msra.mxu0 0.0
    %1580 = vmatprep.subr.mxu0 0.0
    %1581 = vmatpush1.msra.mxu0 0.0
    %1582 = vmatprep.subr.mxu0 0.0
    %1583 = vmatpush1.msra.mxu0 0.0
    %1584 = vmatprep.subr.mxu0 0.0
    %1585 = vmatpush1.msra.mxu0 0.0
    %1586 = vmatprep.subr.mxu0 0.0
    %1587 = vmatpush1.msra.mxu0 0.0
    %1588 = vmatprep.subr.mxu0 0.0
    %1589 = vmatpush1.msra.mxu0 0.0
    %1590 = vmatprep.subr.mxu0 0.0
    %1591 = vmatpush1.msra.mxu0 0.0
    %1592 = vmatprep.subr.mxu0 0.0
    %1593 = vmatpush1.msra.mxu0 0.0
    %1594 = vmatprep.subr.mxu0 0.0
    %1595 = vmatpush1.msra.mxu0 0.0
    %1596 = vmatprep.subr.mxu0 0.0
    %1597 = vmatpush1.msra.mxu0 0.0
    %1598 = vmatprep.mubr.f32.mxu0 0.0
    %1599 = vmatmul.mubr.f32.gmra.mrb[0].mxu0 %v1532
    %v1600 = vpop.f32.mrb[0].mxu0
    %v1601 = vadd.f32 0.0, %v1600
    %v1602 = vpop.f32.mrb[0].mxu0
    %1603 = vdwg.mxu0
    %v1604 = vadd.f32 %v1110, %v1601
    %v1605 = vxor.u32 %v1604, 2147483648
    %v1606 = vmul.f32 %v1605, 1.442695
    %v1607 = vpow.pop %v1606
    %v1608 = vadd.f32 %v1607, 1.0
    %v1609 = vrcp.pop %v1608
    %v1610 = vmul.f32 1.0, %v1609
    %v1611 = vtanh.pop %v1604
    %v1613 = vrot.slane %v1521, 6
    %v1615 = vmul.f32 %v1610, %v1613
    %1617 = vrot.lane.b32.xlu0 %v1611, 32
    %v1618 = vpop.permute.xlu0 %1617
    %v1620 = vmul.f32 %v1610, %v1618
    %1622 = vrot.lane.b32.xlu0 %v1620, 32
    %v1623 = vpop.permute.xlu0 %1622
    %v1625 = vadd.f32 %v1615, %v1623
    %v1626 = vtanh.pop %v1625
    %1628 = vrot.lane.b32.xlu0 %v1626, 32
    %v1629 = vpop.permute.xlu0 %1628
    %v1631 = vmul.f32 %v1610, %v1629
    %1633 = vrot.lane.b32.xlu0 %v1631, 64
    %v1634 = vpop.permute.xlu0 %1633
    %v1635 = vsel %vm139, %v1634, 0
    %1637 = vmatprep.subr.mxu0 0.0
    %1638 = vmatpush1.msra.mxu0 %v1021
    %1639 = vmatprep.subr.mxu0 0.0
    %1640 = vmatpush1.msra.mxu0 %v1022
    %1641 = vmatprep.subr.mxu0 0.0
    %1642 = vmatpush1.msra.mxu0 %v1023
    %1643 = vmatprep.subr.mxu0 0.0
    %1644 = vmatpush1.msra.mxu0 %v1024
    %1645 = vmatprep.subr.mxu0 0.0
    %1646 = vmatpush1.msra.mxu0 0.0
    %1647 = vmatprep.subr.mxu0 0.0
    %1648 = vmatpush1.msra.mxu0 0.0
    %1649 = vmatprep.subr.mxu0 0.0
    %1650 = vmatpush1.msra.mxu0 0.0
    %1651 = vmatprep.subr.mxu0 0.0
    %1652 = vmatpush1.msra.mxu0 0.0
    %1653 = vmatprep.subr.mxu0 0.0
    %1654 = vmatpush1.msra.mxu0 0.0
    %1655 = vmatprep.subr.mxu0 0.0
    %1656 = vmatpush1.msra.mxu0 0.0
    %1657 = vmatprep.subr.mxu0 0.0
    %1658 = vmatpush1.msra.mxu0 0.0
    %1659 = vmatprep.subr.mxu0 0.0
    %1660 = vmatpush1.msra.mxu0 0.0
    %1661 = vmatprep.subr.mxu0 0.0
    %1662 = vmatpush1.msra.mxu0 0.0
    %1663 = vmatprep.subr.mxu0 0.0
    %1664 = vmatpush1.msra.mxu0 0.0
    %1665 = vmatprep.subr.mxu0 0.0
    %1666 = vmatpush1.msra.mxu0 0.0
    %1667 = vmatprep.subr.mxu0 0.0
    %1668 = vmatpush1.msra.mxu0 0.0
    %1669 = vmatprep.subr.mxu0 0.0
    %1670 = vmatpush1.msra.mxu0 0.0
    %1671 = vmatprep.subr.mxu0 0.0
    %1672 = vmatpush1.msra.mxu0 0.0
    %1673 = vmatprep.subr.mxu0 0.0
    %1674 = vmatpush1.msra.mxu0 0.0
    %1675 = vmatprep.subr.mxu0 0.0
    %1676 = vmatpush1.msra.mxu0 0.0
    %1677 = vmatprep.subr.mxu0 0.0
    %1678 = vmatpush1.msra.mxu0 0.0
    %1679 = vmatprep.subr.mxu0 0.0
    %1680 = vmatpush1.msra.mxu0 0.0
    %1681 = vmatprep.subr.mxu0 0.0
    %1682 = vmatpush1.msra.mxu0 0.0
    %1683 = vmatprep.subr.mxu0 0.0
    %1684 = vmatpush1.msra.mxu0 0.0
    %1685 = vmatprep.subr.mxu0 0.0
    %1686 = vmatpush1.msra.mxu0 0.0
    %1687 = vmatprep.subr.mxu0 0.0
    %1688 = vmatpush1.msra.mxu0 0.0
    %1689 = vmatprep.subr.mxu0 0.0
    %1690 = vmatpush1.msra.mxu0 0.0
    %1691 = vmatprep.subr.mxu0 0.0
    %1692 = vmatpush1.msra.mxu0 0.0
    %1693 = vmatprep.subr.mxu0 0.0
    %1694 = vmatpush1.msra.mxu0 0.0
    %1695 = vmatprep.subr.mxu0 0.0
    %1696 = vmatpush1.msra.mxu0 0.0
    %1697 = vmatprep.subr.mxu0 0.0
    %1698 = vmatpush1.msra.mxu0 0.0
    %1699 = vmatprep.subr.mxu0 0.0
    %1700 = vmatpush1.msra.mxu0 0.0
    %1701 = vmatprep.mubr.f32.mxu0 0.0
    %1702 = vmatmul.mubr.f32.gmra.mrb[0].mxu0 %v1635
    %v1703 = vpop.f32.mrb[0].mxu0
    %v1704 = vadd.f32 0.0, %v1703
    %v1705 = vpop.f32.mrb[0].mxu0
    %1706 = vdwg.mxu0
    %v1708 = vrot.slane %v1704, 6
    %v1710 = vadd.f32 %v1110, %v1708
    %v1711 = vxor.u32 %v1710, 2147483648
    %v1712 = vmul.f32 %v1711, 1.442695
    %v1713 = vpow.pop %v1712
    %v1714 = vadd.f32 %v1713, 1.0
    %v1715 = vrcp.pop %v1714
    %v1716 = vmul.f32 1.0, %v1715
    %v1717 = vtanh.pop %v1710
    %v1719 = vrot.slane %v1625, 6
    %v1721 = vmul.f32 %v1716, %v1719
    %1723 = vrot.lane.b32.xlu0 %v1717, 32
    %v1724 = vpop.permute.xlu0 %1723
    %v1726 = vmul.f32 %v1716, %v1724
    %1728 = vrot.lane.b32.xlu0 %v1726, 32
    %v1729 = vpop.permute.xlu0 %1728
    %v1731 = vadd.f32 %v1721, %v1729
    %v1732 = vtanh.pop %v1731
    %1734 = vrot.lane.b32.xlu0 %v1732, 32
    %v1735 = vpop.permute.xlu0 %1734
    %v1737 = vmul.f32 %v1716, %v1735
    %v1739 = vrot.slane %v1737, 2
    %1740 = vrot.lane.b32.xlu0 %v1739, 64
    %v1741 = vpop.permute.xlu0 %1740
    %v1742 = vsel %vm139, %v1741, 0
    %1744 = vmatprep.subr.mxu0 0.0
    %1745 = vmatpush1.msra.mxu0 %v1021
    %1746 = vmatprep.subr.mxu0 0.0
    %1747 = vmatpush1.msra.mxu0 %v1022
    %1748 = vmatprep.subr.mxu0 0.0
    %1749 = vmatpush1.msra.mxu0 %v1023
    %1750 = vmatprep.subr.mxu0 0.0
    %1751 = vmatpush1.msra.mxu0 %v1024
    %1752 = vmatprep.subr.mxu0 0.0
    %1753 = vmatpush1.msra.mxu0 0.0
    %1754 = vmatprep.subr.mxu0 0.0
    %1755 = vmatpush1.msra.mxu0 0.0
    %1756 = vmatprep.subr.mxu0 0.0
    %1757 = vmatpush1.msra.mxu0 0.0
    %1758 = vmatprep.subr.mxu0 0.0
    %1759 = vmatpush1.msra.mxu0 0.0
    %1760 = vmatprep.subr.mxu0 0.0
    %1761 = vmatpush1.msra.mxu0 0.0
    %1762 = vmatprep.subr.mxu0 0.0
    %1763 = vmatpush1.msra.mxu0 0.0
    %1764 = vmatprep.subr.mxu0 0.0
    %1765 = vmatpush1.msra.mxu0 0.0
    %1766 = vmatprep.subr.mxu0 0.0
    %1767 = vmatpush1.msra.mxu0 0.0
    %1768 = vmatprep.subr.mxu0 0.0
    %1769 = vmatpush1.msra.mxu0 0.0
    %1770 = vmatprep.subr.mxu0 0.0
    %1771 = vmatpush1.msra.mxu0 0.0
    %1772 = vmatprep.subr.mxu0 0.0
    %1773 = vmatpush1.msra.mxu0 0.0
    %1774 = vmatprep.subr.mxu0 0.0
    %1775 = vmatpush1.msra.mxu0 0.0
    %1776 = vmatprep.subr.mxu0 0.0
    %1777 = vmatpush1.msra.mxu0 0.0
    %1778 = vmatprep.subr.mxu0 0.0
    %1779 = vmatpush1.msra.mxu0 0.0
    %1780 = vmatprep.subr.mxu0 0.0
    %1781 = vmatpush1.msra.mxu0 0.0
    %1782 = vmatprep.subr.mxu0 0.0
    %1783 = vmatpush1.msra.mxu0 0.0
    %1784 = vmatprep.subr.mxu0 0.0
    %1785 = vmatpush1.msra.mxu0 0.0
    %1786 = vmatprep.subr.mxu0 0.0
    %1787 = vmatpush1.msra.mxu0 0.0
    %1788 = vmatprep.subr.mxu0 0.0
    %1789 = vmatpush1.msra.mxu0 0.0
    %1790 = vmatprep.subr.mxu0 0.0
    %1791 = vmatpush1.msra.mxu0 0.0
    %1792 = vmatprep.subr.mxu0 0.0
    %1793 = vmatpush1.msra.mxu0 0.0
    %1794 = vmatprep.subr.mxu0 0.0
    %1795 = vmatpush1.msra.mxu0 0.0
    %1796 = vmatprep.subr.mxu0 0.0
    %1797 = vmatpush1.msra.mxu0 0.0
    %1798 = vmatprep.subr.mxu0 0.0
    %1799 = vmatpush1.msra.mxu0 0.0
    %1800 = vmatprep.subr.mxu0 0.0
    %1801 = vmatpush1.msra.mxu0 0.0
    %1802 = vmatprep.subr.mxu0 0.0
    %1803 = vmatpush1.msra.mxu0 0.0
    %1804 = vmatprep.subr.mxu0 0.0
    %1805 = vmatpush1.msra.mxu0 0.0
    %1806 = vmatprep.subr.mxu0 0.0
    %1807 = vmatpush1.msra.mxu0 0.0
    %1808 = vmatprep.mubr.f32.mxu0 0.0
    %1809 = vmatmul.mubr.f32.gmra.mrb[0].mxu0 %v1742
    %v1810 = vpop.f32.mrb[0].mxu0
    %v1811 = vadd.f32 0.0, %v1810
    %v1812 = vpop.f32.mrb[0].mxu0
    %1813 = vdwg.mxu0
    %v1815 = vrot.slane %v1811, 4
    %v1817 = vadd.f32 %v1110, %v1815
    %v1818 = vxor.u32 %v1817, 2147483648
    %v1819 = vmul.f32 %v1818, 1.442695
    %v1820 = vpow.pop %v1819
    %v1821 = vadd.f32 %v1820, 1.0
    %v1822 = vrcp.pop %v1821
    %v1823 = vmul.f32 1.0, %v1822
    %v1824 = vtanh.pop %v1817
    %v1826 = vrot.slane %v1731, 6
    %v1828 = vmul.f32 %v1823, %v1826
    %1830 = vrot.lane.b32.xlu0 %v1824, 32
    %v1831 = vpop.permute.xlu0 %1830
    %v1833 = vmul.f32 %v1823, %v1831
    %1835 = vrot.lane.b32.xlu0 %v1833, 32
    %v1836 = vpop.permute.xlu0 %1835
    %v1838 = vadd.f32 %v1828, %v1836
    %v1839 = vtanh.pop %v1838
    %1841 = vrot.lane.b32.xlu0 %v1839, 32
    %v1842 = vpop.permute.xlu0 %1841
    %v1844 = vmul.f32 %v1823, %v1842
    %v1846 = vrot.slane %v1844, 4
    %1847 = vrot.lane.b32.xlu0 %v1846, 64
    %v1848 = vpop.permute.xlu0 %1847
    %v1849 = vsel %vm139, %v1848, 0
    %1851 = vmatprep.subr.mxu0 0.0
    %1852 = vmatpush1.msra.mxu0 %v1021
    %1853 = vmatprep.subr.mxu0 0.0
    %1854 = vmatpush1.msra.mxu0 %v1022
    %1855 = vmatprep.subr.mxu0 0.0
    %1856 = vmatpush1.msra.mxu0 %v1023
    %1857 = vmatprep.subr.mxu0 0.0
    %1858 = vmatpush1.msra.mxu0 %v1024
    %1859 = vmatprep.subr.mxu0 0.0
    %1860 = vmatpush1.msra.mxu0 0.0
    %1861 = vmatprep.subr.mxu0 0.0
    %1862 = vmatpush1.msra.mxu0 0.0
    %1863 = vmatprep.subr.mxu0 0.0
    %1864 = vmatpush1.msra.mxu0 0.0
    %1865 = vmatprep.subr.mxu0 0.0
    %1866 = vmatpush1.msra.mxu0 0.0
    %1867 = vmatprep.subr.mxu0 0.0
    %1868 = vmatpush1.msra.mxu0 0.0
    %1869 = vmatprep.subr.mxu0 0.0
    %1870 = vmatpush1.msra.mxu0 0.0
    %1871 = vmatprep.subr.mxu0 0.0
    %1872 = vmatpush1.msra.mxu0 0.0
    %1873 = vmatprep.subr.mxu0 0.0
    %1874 = vmatpush1.msra.mxu0 0.0
    %1875 = vmatprep.subr.mxu0 0.0
    %1876 = vmatpush1.msra.mxu0 0.0
    %1877 = vmatprep.subr.mxu0 0.0
    %1878 = vmatpush1.msra.mxu0 0.0
    %1879 = vmatprep.subr.mxu0 0.0
    %1880 = vmatpush1.msra.mxu0 0.0
    %1881 = vmatprep.subr.mxu0 0.0
    %1882 = vmatpush1.msra.mxu0 0.0
    %1883 = vmatprep.subr.mxu0 0.0
    %1884 = vmatpush1.msra.mxu0 0.0
    %1885 = vmatprep.subr.mxu0 0.0
    %1886 = vmatpush1.msra.mxu0 0.0
    %1887 = vmatprep.subr.mxu0 0.0
    %1888 = vmatpush1.msra.mxu0 0.0
    %1889 = vmatprep.subr.mxu0 0.0
    %1890 = vmatpush1.msra.mxu0 0.0
    %1891 = vmatprep.subr.mxu0 0.0
    %1892 = vmatpush1.msra.mxu0 0.0
    %1893 = vmatprep.subr.mxu0 0.0
    %1894 = vmatpush1.msra.mxu0 0.0
    %1895 = vmatprep.subr.mxu0 0.0
    %1896 = vmatpush1.msra.mxu0 0.0
    %1897 = vmatprep.subr.mxu0 0.0
    %1898 = vmatpush1.msra.mxu0 0.0
    %1899 = vmatprep.subr.mxu0 0.0
    %1900 = vmatpush1.msra.mxu0 0.0
    %1901 = vmatprep.subr.mxu0 0.0
    %1902 = vmatpush1.msra.mxu0 0.0
    %1903 = vmatprep.subr.mxu0 0.0
    %1904 = vmatpush1.msra.mxu0 0.0
    %1905 = vmatprep.subr.mxu0 0.0
    %1906 = vmatpush1.msra.mxu0 0.0
    %1907 = vmatprep.subr.mxu0 0.0
    %1908 = vmatpush1.msra.mxu0 0.0
    %1909 = vmatprep.subr.mxu0 0.0
    %1910 = vmatpush1.msra.mxu0 0.0
    %1911 = vmatprep.subr.mxu0 0.0
    %1912 = vmatpush1.msra.mxu0 0.0
    %1913 = vmatprep.subr.mxu0 0.0
    %1914 = vmatpush1.msra.mxu0 0.0
    %1915 = vmatprep.mubr.f32.mxu0 0.0
    %1916 = vmatmul.mubr.f32.gmra.mrb[0].mxu0 %v1849
    %v1917 = vpop.f32.mrb[0].mxu0
    %v1918 = vadd.f32 0.0, %v1917
    %v1919 = vpop.f32.mrb[0].mxu0
    %1920 = vdwg.mxu0
    %v1922 = vrot.slane %v1918, 2
    %v1924 = vadd.f32 %v1110, %v1922
    %v1925 = vxor.u32 %v1924, 2147483648
    %v1926 = vmul.f32 %v1925, 1.442695
    %v1927 = vpow.pop %v1926
    %v1928 = vadd.f32 %v1927, 1.0
    %v1929 = vrcp.pop %v1928
    %v1930 = vmul.f32 1.0, %v1929
    %v1931 = vtanh.pop %v1924
    %v1933 = vrot.slane %v1838, 6
    %v1935 = vmul.f32 %v1930, %v1933
    %1937 = vrot.lane.b32.xlu0 %v1931, 32
    %v1938 = vpop.permute.xlu0 %1937
    %v1940 = vmul.f32 %v1930, %v1938
    %1942 = vrot.lane.b32.xlu0 %v1940, 32
    %v1943 = vpop.permute.xlu0 %1942
    %v1945 = vadd.f32 %v1935, %v1943
    %v1946 = vtanh.pop %v1945
    %1948 = vrot.lane.b32.xlu0 %v1946, 32
    %v1949 = vpop.permute.xlu0 %1948
    %v1951 = vmul.f32 %v1930, %v1949
    %1953 = vrot.lane.b32.xlu0 %v1951, 64
    %v1954 = vpop.permute.xlu0 %1953
    %v1956 = vsel %vm575, %v1954, 0.0
    %1957 = vadd.xlane.f32.xlu0 %v1956
    %v1958 = vpop.xlane.xlu0 %1957
    %v1959 = vrcp.pop 32.0
    %v1960 = vmul.f32 %v1958, %v1959
    %v1961 = vsub.f32 %v1951, %v1960
    %v1962 = vmul.f32 %v1961, %v1961
    %1964 = vrot.lane.b32.xlu0 %v1962, 64
    %v1965 = vpop.permute.xlu0 %1964
    %v1967 = vsel %vm575, %v1965, 0.0
    %1968 = vadd.xlane.f32.xlu0 %v1967
    %v1969 = vpop.xlane.xlu0 %1968
    %v1970 = vmul.f32 %v1969, %v1959
    %v1971 = vadd.f32 %v1970, 1e-05
    %v1972 = vrsqrt.pop %v1971
    %v1973 = vmul.f32 %v1961, %v1972
    %v1974 = vld [vmem:[%s7] sm:$0x1]
    %v1976 = vlaneseq
    %v1977 = vshrl.u32 %v1976, 7
    %v1978 = vsub.s32 0, %v1977
    %v1979 = vrot.slane %v1974, %v1978
    %1980 = vrot.lane.b32.xlu0 %v1979, 64
    %v1981 = vpop.permute.xlu0 %1980
    %v1983 = vmul.f32 %v1973, %v1981
    %v1984 = vld [vmem:[%s8] sm:$0x1]
    %v1986 = vlaneseq
    %v1987 = vshrl.u32 %v1986, 7
    %v1988 = vsub.s32 0, %v1987
    %v1989 = vrot.slane %v1984, %v1988
    %1990 = vrot.lane.b32.xlu0 %v1989, 64
    %v1991 = vpop.permute.xlu0 %1990
    %v1993 = vadd.f32 %v1983, %v1991
    %v1994 = vld [vmem:[%s9] sm:$0xff]
    %v1995 = vld [vmem:[%s9 + $0x8] sm:$0xff]
    %v1996 = vld [vmem:[%s9 + $0x10] sm:$0xff]
    %v1997 = vld [vmem:[%s9 + $0x18] sm:$0xff]
    %v1998 = vld [vmem:[%s10] sm:$0x1]
    %v2000 = vlaneseq
    %v2001 = vshrl.u32 %v2000, 7
    %v2002 = vsub.s32 0, %v2001
    %v2003 = vrot.slane %v1998, %v2002
    %v2006 = vrot.slane %v1993, 6
    %2007 = vrot.lane.b32.xlu0 %v2006, 64
    %v2008 = vpop.permute.xlu0 %2007
    %v2009 = vsel %vm139, %v2008, 0
    %2011 = vmatprep.subr.mxu0 0.0
    %2012 = vmatpush1.msra.mxu0 %v1994
    %2013 = vmatprep.subr.mxu0 0.0
    %2014 = vmatpush1.msra.mxu0 %v1995
    %2015 = vmatprep.subr.mxu0 0.0
    %2016 = vmatpush1.msra.mxu0 %v1996
    %2017 = vmatprep.subr.mxu0 0.0
    %2018 = vmatpush1.msra.mxu0 %v1997
    %2019 = vmatprep.subr.mxu0 0.0
    %2020 = vmatpush1.msra.mxu0 0.0
    %2021 = vmatprep.subr.mxu0 0.0
    %2022 = vmatpush1.msra.mxu0 0.0
    %2023 = vmatprep.subr.mxu0 0.0
    %2024 = vmatpush1.msra.mxu0 0.0
    %2025 = vmatprep.subr.mxu0 0.0
    %2026 = vmatpush1.msra.mxu0 0.0
    %2027 = vmatprep.subr.mxu0 0.0
    %2028 = vmatpush1.msra.mxu0 0.0
    %2029 = vmatprep.subr.mxu0 0.0
    %2030 = vmatpush1.msra.mxu0 0.0
    %2031 = vmatprep.subr.mxu0 0.0
    %2032 = vmatpush1.msra.mxu0 0.0
    %2033 = vmatprep.subr.mxu0 0.0
    %2034 = vmatpush1.msra.mxu0 0.0
    %2035 = vmatprep.subr.mxu0 0.0
    %2036 = vmatpush1.msra.mxu0 0.0
    %2037 = vmatprep.subr.mxu0 0.0
    %2038 = vmatpush1.msra.mxu0 0.0
    %2039 = vmatprep.subr.mxu0 0.0
    %2040 = vmatpush1.msra.mxu0 0.0
    %2041 = vmatprep.subr.mxu0 0.0
    %2042 = vmatpush1.msra.mxu0 0.0
    %2043 = vmatprep.subr.mxu0 0.0
    %2044 = vmatpush1.msra.mxu0 0.0
    %2045 = vmatprep.subr.mxu0 0.0
    %2046 = vmatpush1.msra.mxu0 0.0
    %2047 = vmatprep.subr.mxu0 0.0
    %2048 = vmatpush1.msra.mxu0 0.0
    %2049 = vmatprep.subr.mxu0 0.0
    %2050 = vmatpush1.msra.mxu0 0.0
    %2051 = vmatprep.subr.mxu0 0.0
    %2052 = vmatpush1.msra.mxu0 0.0
    %2053 = vmatprep.subr.mxu0 0.0
    %2054 = vmatpush1.msra.mxu0 0.0
    %2055 = vmatprep.subr.mxu0 0.0
    %2056 = vmatpush1.msra.mxu0 0.0
    %2057 = vmatprep.subr.mxu0 0.0
    %2058 = vmatpush1.msra.mxu0 0.0
    %2059 = vmatprep.subr.mxu0 0.0
    %2060 = vmatpush1.msra.mxu0 0.0
    %2061 = vmatprep.subr.mxu0 0.0
    %2062 = vmatpush1.msra.mxu0 0.0
    %2063 = vmatprep.subr.mxu0 0.0
    %2064 = vmatpush1.msra.mxu0 0.0
    %2065 = vmatprep.subr.mxu0 0.0
    %2066 = vmatpush1.msra.mxu0 0.0
    %2067 = vmatprep.subr.mxu0 0.0
    %2068 = vmatpush1.msra.mxu0 0.0
    %2069 = vmatprep.subr.mxu0 0.0
    %2070 = vmatpush1.msra.mxu0 0.0
    %2071 = vmatprep.subr.mxu0 0.0
    %2072 = vmatpush1.msra.mxu0 0.0
    %2073 = vmatprep.subr.mxu0 0.0
    %2074 = vmatpush1.msra.mxu0 0.0
    %2075 = vmatprep.mubr.f32.mxu0 0.0
    %2076 = vmatmul.mubr.f32.gmra.mrb[0].mxu0 %v2009
    %v2077 = vpop.f32.mrb[0].mxu0
    %v2078 = vadd.f32 %v2003, %v2077
    %v2079 = vpop.f32.mrb[0].mxu0
    %2080 = vdwg.mxu0
    %v2083 = vunpack.c.l.s4 1966171168
    %v2084 = vunpack.c.0.s8 %v2083
    %v2085 = vlaneseq
    %v2086 = vshrl.u32 %v2085, 7
    %v2087 = vsub.s32 %v2084, %v2086
    %v2088 = vrot.slane %v2078, %v2087
    %v2089 = vcombine.high %v2088, %v2088
    %v2091 = vunpack.c.l.s4 1966171168
    %v2092 = vunpack.c.0.s8 %v2091
    %v2093 = vlaneseq
    %v2094 = vshrl.u32 %v2093, 7
    %v2095 = vsub.s32 %v2092, %v2094
    %v2096 = vrot.slane %v2088, %v2095
    %v2098 = vunpack.c.l.s4 1966171168
    %v2099 = vunpack.c.0.s8 %v2098
    %v2100 = vlaneseq
    %v2101 = vshrl.u32 %v2100, 7
    %v2102 = vsub.s32 %v2099, %v2101
    %v2103 = vrot.slane %v2089, %v2102
    %v2104 = vlaneseq
    %v2105 = vshrl.u32 %v2104, 7
    %v2106 = vsub.s32 0, %v2105
    %v2107 = vrot.slane %v2078, %v2106
    %2109 = vbcast.lane.b32.xlu0 %v2107, 256
    %v2110 = vpop.permute.xlu0 %2109
    %v2111 = vlaneseq
    %v2112 = vshrl.u32 %v2111, 7
    %v2113 = vsub.s32 1, %v2112
    %v2114 = vrot.slane %v2078, %v2113
    %2116 = vbcast.lane.b32.xlu0 %v2114, 256
    %v2117 = vpop.permute.xlu0 %2116
    %v2118 = vlaneseq
    %v2119 = vshrl.u32 %v2118, 7
    %v2120 = vsub.s32 0, %v2119
    %v2121 = vrot.slane %v2096, %v2120
    %v2122 = vlaneseq
    %v2123 = vshrl.u32 %v2122, 7
    %v2124 = vsub.s32 0, %v2123
    %v2125 = vrot.slane %v2103, %v2124
    %vm2128 = vcmp.ge.f32.partialorder %v2121, %v2110
    %vm2129 = vcmp.ge.f32.partialorder %v2125, %v2117
    %v2130 = vsel %vm2128, 1, 0
    %v2131 = vsel %vm2129, 1, 0
    %v2132 = vcvt.s32.f32 %v2130
    %v2133 = vcvt.s32.f32 %v2131
    %vm2134 = vcmask 64512
    %v2135 = vsel %vm2134, %v2132, 0.0
    %2136 = vadd.xlane.f32.xlu0 %v2135
    %v2137 = vpop.xlane.xlu0 %2136
    %v2138 = vsel %vm2134, %v2133, 0.0
    %2139 = vadd.xlane.f32.xlu0 %v2138
    %v2140 = vpop.xlane.xlu0 %2139
    %v2141 = vmul.f32 %v2132, %v2121
    %v2142 = vmul.f32 %v2133, %v2125
    %v2143 = vsel %vm2134, %v2141, 0.0
    %2144 = vadd.xlane.f32.xlu0 %v2143
    %v2145 = vpop.xlane.xlu0 %2144
    %v2146 = vsel %vm2134, %v2142, 0.0
    %2147 = vadd.xlane.f32.xlu0 %v2146
    %v2148 = vpop.xlane.xlu0 %2147
    %v2149 = vlaneseq
    %v2150 = vshrl.u32 %v2149, 7
    %v2151 = vsub.s32 0, %v2150
    %v2152 = vrot.slane %v2078, %v2151
    %2154 = vbcast.lane.b32.xlu0 %v2152, 256
    %v2155 = vpop.permute.xlu0 %2154
    %v2156 = vlaneseq
    %v2157 = vshrl.u32 %v2156, 7
    %v2158 = vsub.s32 1, %v2157
    %v2159 = vrot.slane %v2078, %v2158
    %2161 = vbcast.lane.b32.xlu0 %v2159, 256
    %v2162 = vpop.permute.xlu0 %2161
    %v2165 = vmul.f32 %v2137, %v2155
    %v2166 = vmul.f32 %v2140, %v2162
    %v2167 = vadd.f32 %v2165, 1.0
    %v2168 = vadd.f32 %v2166, 1.0
    %vm2169 = vcmp.gt.f32.partialorder %v2167, %v2145
    %vm2170 = vcmp.gt.f32.partialorder %v2168, %v2148
    %v2171 = vsel %vm2169, 1, 0
    %v2172 = vsel %vm2170, 1, 0
    %v2173 = vcvt.s32.f32 %v2171
    %v2174 = vcvt.s32.f32 %v2172
    %2177 = vset.pattern.permute.xlu0 0
    %2178 = vperm.xlu0 %2177, %v2173
    %v2179 = vpop.permute.xlu0 %2178
    %2180 = vset.pattern.permute.xlu0 0
    %2181 = vperm.xlu0 %2180, %v2174
    %v2182 = vpop.permute.xlu0 %2181
    %v2183 = vlaneseq
    %v2184 = vand.u32 %v2183, 127
    %v2185 = vlaneseq
    %v2186 = vshrl.u32 %v2185, 7
    %v2187 = vsub.s32 %v2184, %v2186
    %v2188 = vrot.slane %v2179, %v2187
    %v2189 = vlaneseq
    %v2190 = vshrl.u32 %v2189, 7
    %v2191 = vsub.s32 %v2184, %v2190
    %v2192 = vrot.slane %v2182, %v2191
    %vm2193 = vcmask 1041409
    %v2194 = vsel %vm2193, %v2192, %v2188
    %vm2196 = vcmask 58368
    %v2197 = vsel %vm2196, %v2194, 0.0
    %2198 = vadd.xlane.f32.xlu0 %v2197
    %v2199 = vpop.xlane.xlu0 %2198
    %v2200 = vmul.f32 %v2078, %v2194
    %v2201 = vsel %vm2196, %v2200, 0.0
    %2202 = vadd.xlane.f32.xlu0 %v2201
    %v2203 = vpop.xlane.xlu0 %2202
    %v2204 = vsub.f32 %v2203, 1.0
    %v2205 = vrcp.pop %v2199
    %v2206 = vmul.f32 %v2204, %v2205
    %v2207 = vsub.f32 %v2078, %v2206
    %v2208 = vmax.f32 %v2207, 0.0
    %2209 = vst.msk [vmem:[#allocation3] sm:$0x3] %vm2196, %v2208
    // Predicated region
    $region46: #{lstm_model_forward.1} parent=1 // pred_check
      _
    $region47: #{lstm_model_forward.1} parent=1 // pred_check_branch
      %2211 = sbr.rel (0) target = $region49
    $region48: #{lstm_model_forward.1} parent=1 // pred_region
      %s2213 = ssub.s32 32, 32
      %2214 = vsyncadd [#allocation4], %s2213
      %s2216 = sshll.u32 [#allocation3], 4
      %s2217 = int_to_ptr.vmem [resolvable:$true] %s2216
      %2219 = dma.vmem_to_hbm [thread:$0]  %s2217, 32, %s11, [#allocation4]
    $region49: #{lstm_model_forward.1} parent=1 // pred_fallthru
      _
    // Predicated region
    $region50: #{lstm_model_forward.1} parent=1 // pred_check
      _
    $region51: #{lstm_model_forward.1} parent=1 // pred_check_branch
      %2221 = sbr.rel (0) target = $region53
    $region52: #{lstm_model_forward.1} parent=1 // pred_region
      %2222 = dma.done [#allocation4], 32
    $region53: #{lstm_model_forward.1} parent=1 // pred_fallthru
      _
    %2223 = vsyncpa [#allocation4], 1

</llo_original>
